<compile_context>
chip_gen: v7x
topology: tpu7x:2x2x1
jax: 0.10.0
libtpu: 0.0.40
codegen_flags: <defaults>
</compile_context>

<pallas_src>
import functools

import numpy as np
import jax
import jax.numpy as jnp
from jax.experimental import pallas as pl
from jax.experimental.pallas import tpu as pltpu

EPS = 1e-5


# ---------------------------------------------------------------------------
# Kernel
# ---------------------------------------------------------------------------
def _bn_lane(h, afold, gamma, beta, inv_n):
    """BatchNorm (batch stats) over a lane-dense (rows, W*C) activation.

    afold : (W*C, W*C) bf16 0/1 matrix, afold[i, j] = (i % C == j % C).  One
            bf16 matmul both folds the per-(w, c) lane sums into per-channel
            sums and broadcasts them back across the W lane-groups.
    The row sums are hi/lo bf16-split so the single bf16 push keeps ~f32
    precision (no emulated f32 matmul).  One-pass stats: var = E[x^2]-E[x]^2,
    clamped at 0 (conv outputs have small means, so no bad cancellation).
    """
    f32 = jnp.float32
    s = jnp.sum(h, axis=0, keepdims=True)              # (1, WC) f32
    s2 = jnp.sum(h * h, axis=0, keepdims=True)          # (1, WC) f32
    both = jnp.concatenate([s, s2], axis=0)             # (2, WC) f32
    hi = both.astype(jnp.bfloat16)
    lo = (both - hi.astype(f32)).astype(jnp.bfloat16)
    packed = jnp.concatenate([hi, lo], axis=0)           # (4, WC) bf16
    folded = jnp.dot(packed, afold, preferred_element_type=f32)   # (4, WC) f32
    mu = (folded[0:1] + folded[2:3]) * inv_n
    ex2 = (folded[1:2] + folded[3:4]) * inv_n
    var = jnp.maximum(ex2 - mu * mu, 0.0)
    scale = jax.lax.rsqrt(var + EPS) * gamma
    return (h - mu) * scale + beta


def bottleneck_kernel(x_ref, w64_ref, w256_ref, gb64_ref, gb256_ref, o_ref, *,
                      H, W, P, Cin, Cout):
    f32 = jnp.float32
    bf16 = jnp.bfloat16
    NH = x_ref.shape[0]
    WP = W * P
    WCin = W * Cin
    WCout = W * Cout
    inv_n = 1.0 / float(NH * W)           # 1 / (N*H*W)

    # Static, sublane-aligned views into the packed constant slabs.
    w1bd = w64_ref[0:WCin, :]                              # (W*Cin, W*P) bf16
    mcat = w64_ref[WCin:WCin + 3 * WP, :]                  # (3*W*P, W*P) bf16
    afold_p = w64_ref[WCin + 3 * WP:WCin + 4 * WP, :]      # (W*P, W*P)   bf16
    w3bd = w256_ref[0:WP, :]                               # (W*P, W*Cout) bf16
    afold_q = w256_ref[WP:WP + WCout, :]                   # (W*Cout, W*Cout) bf16

    g1 = gb64_ref[0:1, :]
    b1 = gb64_ref[1:2, :]
    g2 = gb64_ref[2:3, :]
    b2 = gb64_ref[3:4, :]
    g3 = gb256_ref[0:1, :]
    b3 = gb256_ref[1:2, :]

    # x stays live for the residual add (no second read of x_ref).
    x = x_ref[...]                                         # (NH, W*Cin) f32

    # ---- conv1 (1x1) + bn1 + relu : one lane-dense matmul -------------------
    h1 = jnp.dot(x.astype(bf16), w1bd, preferred_element_type=f32)
    h1 = _bn_lane(h1, afold_p, g1, b1, inv_n)
    h1 = jnp.maximum(h1, 0.0)

    # ---- conv2 (3x3, stride=1, pad=1) + bn2 + relu ---------------------------
    # H-direction shifts are pure sublane data movement (zero row + slices);
    # image boundaries are zeroed with an in-kernel iota mask.  The W-shifts +
    # channel mixing of the 3 kernel rows are folded into a single
    # (NH, 3*W*P) @ (3*W*P, W*P) matmul.
    zrow = jnp.zeros((1, WP), f32)
    up = jnp.concatenate([zrow, h1[:NH - 1, :]], axis=0)   # row r -> h1[r-1]
    dn = jnp.concatenate([h1[1:, :], zrow], axis=0)        # row r -> h1[r+1]
    row = jax.lax.broadcasted_iota(jnp.int32, (NH, 1), 0)
    if (H & (H - 1)) == 0:
        hrow = jnp.bitwise_and(row, H - 1)
    else:
        hrow = jax.lax.rem(row, H)
    up = jnp.where(hrow > 0, up, 0.0)                      # zero at h == 0
    dn = jnp.where(hrow < H - 1, dn, 0.0)                  # zero at h == H-1
    cat = jnp.concatenate([up, h1, dn], axis=1).astype(bf16)   # (NH, 3*W*P)
    h2 = jnp.dot(cat, mcat, preferred_element_type=f32)
    h2 = _bn_lane(h2, afold_p, g2, b2, inv_n)
    h2 = jnp.maximum(h2, 0.0)

    # ---- conv3 (1x1) + bn3 + residual + relu ---------------------------------
    h3 = jnp.dot(h2.astype(bf16), w3bd, preferred_element_type=f32)
    h3 = _bn_lane(h3, afold_q, g3, b3, inv_n)
    o_ref[...] = jnp.maximum(h3 + x, 0.0).astype(o_ref.dtype)


# ---------------------------------------------------------------------------
# Wrapper: build lane-dense operator slabs (vectorized) and call the kernel.
# ---------------------------------------------------------------------------
def _group_fold(width, c):
    """(W*C, W*C) 0/1 matrix folding per-(w,c) lane sums into per-channel sums
    (and broadcasting them back across the W groups)."""
    idx = np.arange(width * c) % c
    return (idx[:, None] == idx[None, :]).astype(np.float32)


@jax.jit
def bottleneck_pallas(x, w1, w2, w3, g1, b1, g2, b2, g3, b3):
    """x: (N, H, W, Cin) f32; w1: (Cin, P); w2: (3, 3, P, P) HWIO; w3: (P, 4P)."""
    N, H, W, Cin = x.shape
    P = w1.shape[1]
    Cout = w3.shape[1]
    assert Cin == Cout, "stride=1 / downsample=None requires inplanes == planes*4"
    NH = N * H
    f32 = jnp.float32
    bf16 = jnp.bfloat16

    # Lane-dense HBM-facing slab (free reshape of contiguous NHWC).
    x2d = x.reshape(NH, W * Cin).astype(f32)

    # 1x1 convs as block-diagonal lane-dense operators (vectorized via kron).
    eye_w = np.eye(W, dtype=np.float32)
    w1bd = jnp.kron(eye_w, w1)                      # (W*Cin, W*P)
    w3bd = jnp.kron(eye_w, w3)                      # (W*P,  W*Cout)

    # Fused banded operator for the three 3x3 kernel rows: (3*W*P, W*P).
    wi = np.arange(W)[:, None]
    wo = np.arange(W)[None, :]
    sel = np.stack([(wi - wo + 1 == kx).astype(np.float32) for kx in range(3)])
    band = jnp.einsum("kab,ykio->yaibo", jnp.asarray(sel), w2)   # (3, W, P, W, P)
    mcat = band.reshape(3 * W * P, W * P)

    afold_p = jnp.asarray(_group_fold(W, P))        # (W*P, W*P) 0/1
    afold_q = jnp.asarray(_group_fold(W, Cout))     # (W*Cout, W*Cout) 0/1

    # Packed constant slabs: two bf16 (weights/operators), two f32 (gamma/beta).
    w64 = jnp.concatenate([w1bd, mcat, afold_p], axis=0).astype(bf16)   # (W*Cin+4*W*P, W*P)
    w256 = jnp.concatenate([w3bd, afold_q], axis=0).astype(bf16)        # (W*P+W*Cout, W*Cout)
    gb64 = jnp.stack([jnp.tile(g1, W), jnp.tile(b1, W),
                      jnp.tile(g2, W), jnp.tile(b2, W)]).astype(f32)    # (4, W*P)
    gb256 = jnp.stack([jnp.tile(g3, W), jnp.tile(b3, W)]).astype(f32)   # (2, W*Cout)

    vmem = pl.BlockSpec(memory_space=pltpu.MemorySpace.VMEM)
    kernel = functools.partial(bottleneck_kernel, H=H, W=W, P=P, Cin=Cin, Cout=Cout)
    out2d = pl.pallas_call(
        kernel,
        out_shape=jax.ShapeDtypeStruct((NH, W * Cout), f32),
        in_specs=[vmem] * 5,
        out_specs=vmem,
    )(x2d, w64, w256, gb64, gb256)

    return out2d.reshape(N, H, W, Cout)


# ---------------------------------------------------------------------------
# Pure-JAX reference.  Matmul inputs are quantised to bf16 (then computed in
# f32) to match the kernel's precision policy; BN / residual are f32.
# ---------------------------------------------------------------------------
def bottleneck_ref(x, w1, w2, w3, g1, b1, g2, b2, g3, b3):
    def q(t):
        return t.astype(jnp.bfloat16).astype(jnp.float32)

    def bn(h, g, b):
        mu = jnp.mean(h, axis=(0, 1, 2), keepdims=True)
        var = jnp.mean((h - mu) ** 2, axis=(0, 1, 2), keepdims=True)
        return (h - mu) * jax.lax.rsqrt(var + EPS) * g + b

    h = jnp.einsum("nhwc,cp->nhwp", q(x), q(w1))
    h = jnp.maximum(bn(h, g1, b1), 0.0)
    h = jax.lax.conv_general_dilated(
        q(h), q(w2), window_strides=(1, 1), padding="SAME",
        dimension_numbers=("NHWC", "HWIO", "NHWC"))
    h = jnp.maximum(bn(h, g2, b2), 0.0)
    h = jnp.einsum("nhwp,pq->nhwq", q(h), q(w3))
    h = bn(h, g3, b3)
    return jnp.maximum(h + x, 0.0)


if __name__ == "__main__":
    # Bottleneck(inplanes=16, planes=4, stride=1, downsample=None)
    N, H, W = 2, 16, 16
    planes = 4
    inplanes = planes * 4      # residual add requires inplanes == planes * expansion

    key = jax.random.PRNGKey(0)
    kx, k1, k2, k3 = jax.random.split(key, 4)

    x = jax.random.normal(kx, (N, H, W, inplanes), jnp.float32)

    # Conv weights (bias=False).  Layouts: w1 (Cin, P), w2 (kh, kw, P, P) HWIO,
    # w3 (P, 4P) -- i.e. the PyTorch OIHW weights transposed for NHWC math.
    w1 = jax.random.normal(k1, (inplanes, planes), jnp.float32) * 0.1
    w2 = jax.random.normal(k2, (3, 3, planes, planes), jnp.float32) * 0.1
    w3 = jax.random.normal(k3, (planes, planes * 4), jnp.float32) * 0.1

    # BatchNorm affine params at PyTorch defaults: gamma=1, beta=0.
    g1 = jnp.ones((planes,), jnp.float32)
    b1 = jnp.zeros((planes,), jnp.float32)
    g2 = jnp.ones((planes,), jnp.float32)
    b2 = jnp.zeros((planes,), jnp.float32)
    g3 = jnp.ones((planes * 4,), jnp.float32)
    b3 = jnp.zeros((planes * 4,), jnp.float32)

    out = bottleneck_pallas(x, w1, w2, w3, g1, b1, g2, b2, g3, b3)
    out = jax.block_until_ready(out)

    ref = bottleneck_ref(x, w1, w2, w3, g1, b1, g2, b2, g3, b3)
    err = float(jnp.max(jnp.abs(out - ref)))
    assert jnp.allclose(out, ref, atol=1e-2, rtol=1e-2), err

    print("KERNEL_OK")
</pallas_src>

<mosaic_0001>
module attributes {stable_mosaic.version = 11 : i64} {
  func.func @bottleneck_kernel(%arg0: memref<32x256xf32, #tpu.memory_space<vmem>>, %arg1: memref<512x64xbf16, #tpu.memory_space<vmem>>, %arg2: memref<320x256xbf16, #tpu.memory_space<vmem>>, %arg3: memref<4x64xf32, #tpu.memory_space<vmem>>, %arg4: memref<2x256xf32, #tpu.memory_space<vmem>>, %arg5: memref<32x256xf32, #tpu.memory_space<vmem>>) attributes {dimension_semantics = [], scalar_prefetch = 0 : i64, scratch_operands = 0 : i64, tpu.core_type = #tpu.core_type<tc>} {
    %c0 = arith.constant 0 : index
    %c0_0 = arith.constant 0 : index
    %0 = vector.load %arg1[%c0, %c0_0] : memref<512x64xbf16, #tpu.memory_space<vmem>>, vector<256x64xbf16>
    %c256 = arith.constant 256 : index
    %c0_1 = arith.constant 0 : index
    %1 = vector.load %arg1[%c256, %c0_1] : memref<512x64xbf16, #tpu.memory_space<vmem>>, vector<192x64xbf16>
    %c448 = arith.constant 448 : index
    %c0_2 = arith.constant 0 : index
    %2 = vector.load %arg1[%c448, %c0_2] : memref<512x64xbf16, #tpu.memory_space<vmem>>, vector<64x64xbf16>
    %c0_3 = arith.constant 0 : index
    %c0_4 = arith.constant 0 : index
    %3 = vector.load %arg2[%c0_3, %c0_4] : memref<320x256xbf16, #tpu.memory_space<vmem>>, vector<64x256xbf16>
    %c64 = arith.constant 64 : index
    %c0_5 = arith.constant 0 : index
    %4 = vector.load %arg2[%c64, %c0_5] : memref<320x256xbf16, #tpu.memory_space<vmem>>, vector<256x256xbf16>
    %c0_6 = arith.constant 0 : index
    %c0_7 = arith.constant 0 : index
    %5 = vector.load %arg3[%c0_6, %c0_7] : memref<4x64xf32, #tpu.memory_space<vmem>>, vector<1x64xf32>
    %c1 = arith.constant 1 : index
    %c0_8 = arith.constant 0 : index
    %6 = vector.load %arg3[%c1, %c0_8] : memref<4x64xf32, #tpu.memory_space<vmem>>, vector<1x64xf32>
    %c2 = arith.constant 2 : index
    %c0_9 = arith.constant 0 : index
    %7 = vector.load %arg3[%c2, %c0_9] : memref<4x64xf32, #tpu.memory_space<vmem>>, vector<1x64xf32>
    %c3 = arith.constant 3 : index
    %c0_10 = arith.constant 0 : index
    %8 = vector.load %arg3[%c3, %c0_10] : memref<4x64xf32, #tpu.memory_space<vmem>>, vector<1x64xf32>
    %c0_11 = arith.constant 0 : index
    %c0_12 = arith.constant 0 : index
    %9 = vector.load %arg4[%c0_11, %c0_12] : memref<2x256xf32, #tpu.memory_space<vmem>>, vector<1x256xf32>
    %c1_13 = arith.constant 1 : index
    %c0_14 = arith.constant 0 : index
    %10 = vector.load %arg4[%c1_13, %c0_14] : memref<2x256xf32, #tpu.memory_space<vmem>>, vector<1x256xf32>
    %c0_15 = arith.constant 0 : index
    %c0_16 = arith.constant 0 : index
    %11 = vector.load %arg0[%c0_15, %c0_16] : memref<32x256xf32, #tpu.memory_space<vmem>>, vector<32x256xf32>
    %12 = arith.truncf %11 : vector<32x256xf32> to vector<32x256xbf16>
    %cst = arith.constant dense<0.000000e+00> : vector<32x64xf32>
    %13 = tpu.matmul %12, %0, %cst {dimension_numbers = #tpu.dot_dimension_numbers<[1], [0], [0], [1], [0, 0, 1, 1], [], []>} : vector<32x256xbf16>, vector<256x64xbf16>, vector<32x64xf32> -> vector<32x64xf32>
    %cst_17 = arith.constant dense<0.000000e+00> : vector<64xf32>
    %14 = vector.multi_reduction <add>, %13, %cst_17 [0] : vector<32x64xf32> to vector<64xf32>
    %15 = vector.shape_cast %14 : vector<64xf32> to vector<1x64xf32>
    %16 = arith.mulf %13, %13 : vector<32x64xf32>
    %cst_18 = arith.constant dense<0.000000e+00> : vector<64xf32>
    %17 = vector.multi_reduction <add>, %16, %cst_18 [0] : vector<32x64xf32> to vector<64xf32>
    %18 = vector.shape_cast %17 : vector<64xf32> to vector<1x64xf32>
    %19 = tpu.concatenate %15, %18 in 0 : vector<1x64xf32>, vector<1x64xf32> -> vector<2x64xf32>
    %20 = arith.truncf %19 : vector<2x64xf32> to vector<2x64xbf16>
    %21 = arith.extf %20 : vector<2x64xbf16> to vector<2x64xf32>
    %22 = arith.subf %19, %21 : vector<2x64xf32>
    %23 = arith.truncf %22 : vector<2x64xf32> to vector<2x64xbf16>
    %24 = tpu.concatenate %20, %23 in 0 : vector<2x64xbf16>, vector<2x64xbf16> -> vector<4x64xbf16>
    %cst_19 = arith.constant dense<0.000000e+00> : vector<4x64xf32>
    %25 = tpu.matmul %24, %2, %cst_19 {dimension_numbers = #tpu.dot_dimension_numbers<[1], [0], [0], [1], [0, 0, 1, 1], [], []>} : vector<4x64xbf16>, vector<64x64xbf16>, vector<4x64xf32> -> vector<4x64xf32>
    %26 = vector.extract_strided_slice %25 {offsets = [0, 0], sizes = [1, 64], strides = [1, 1]} : vector<4x64xf32> to vector<1x64xf32>
    %27 = vector.extract_strided_slice %25 {offsets = [2, 0], sizes = [1, 64], strides = [1, 1]} : vector<4x64xf32> to vector<1x64xf32>
    %28 = arith.addf %26, %27 : vector<1x64xf32>
    %cst_20 = arith.constant 0.001953125 : f32
    %29 = vector.broadcast %cst_20 : f32 to vector<1x64xf32>
    %30 = arith.mulf %28, %29 : vector<1x64xf32>
    %31 = vector.extract_strided_slice %25 {offsets = [1, 0], sizes = [1, 64], strides = [1, 1]} : vector<4x64xf32> to vector<1x64xf32>
    %32 = vector.extract_strided_slice %25 {offsets = [3, 0], sizes = [1, 64], strides = [1, 1]} : vector<4x64xf32> to vector<1x64xf32>
    %33 = arith.addf %31, %32 : vector<1x64xf32>
    %cst_21 = arith.constant 0.001953125 : f32
    %34 = vector.broadcast %cst_21 : f32 to vector<1x64xf32>
    %35 = arith.mulf %33, %34 : vector<1x64xf32>
    %36 = arith.mulf %30, %30 : vector<1x64xf32>
    %37 = arith.subf %35, %36 : vector<1x64xf32>
    %cst_22 = arith.constant 0.000000e+00 : f32
    %38 = vector.broadcast %cst_22 : f32 to vector<1x64xf32>
    %39 = arith.maximumf %37, %38 : vector<1x64xf32>
    %cst_23 = arith.constant 9.99999974E-6 : f32
    %40 = vector.broadcast %cst_23 : f32 to vector<1x64xf32>
    %41 = arith.addf %39, %40 : vector<1x64xf32>
    %42 = math.rsqrt %41 : vector<1x64xf32>
    %43 = arith.mulf %42, %5 : vector<1x64xf32>
    %44 = vector.broadcast %30 : vector<1x64xf32> to vector<32x64xf32>
    %45 = arith.subf %13, %44 : vector<32x64xf32>
    %46 = vector.broadcast %43 : vector<1x64xf32> to vector<32x64xf32>
    %47 = arith.mulf %45, %46 : vector<32x64xf32>
    %48 = vector.broadcast %6 : vector<1x64xf32> to vector<32x64xf32>
    %49 = arith.addf %47, %48 : vector<32x64xf32>
    %cst_24 = arith.constant 0.000000e+00 : f32
    %50 = vector.broadcast %cst_24 : f32 to vector<32x64xf32>
    %51 = arith.maximumf %49, %50 : vector<32x64xf32>
    %cst_25 = arith.constant 0.000000e+00 : f32
    %52 = vector.broadcast %cst_25 : f32 to vector<1x64xf32>
    %53 = vector.extract_strided_slice %51 {offsets = [0, 0], sizes = [31, 64], strides = [1, 1]} : vector<32x64xf32> to vector<31x64xf32>
    %54 = tpu.concatenate %52, %53 in 0 : vector<1x64xf32>, vector<31x64xf32> -> vector<32x64xf32>
    %55 = vector.extract_strided_slice %51 {offsets = [1, 0], sizes = [31, 64], strides = [1, 1]} : vector<32x64xf32> to vector<31x64xf32>
    %56 = tpu.concatenate %55, %52 in 0 : vector<31x64xf32>, vector<1x64xf32> -> vector<32x64xf32>
    %57 = tpu.iota {dimensions = array<i32: 0>} : vector<32x1xi32>
    %c15_i32 = arith.constant 15 : i32
    %58 = vector.broadcast %c15_i32 : i32 to vector<32x1xi32>
    %59 = arith.andi %57, %58 : vector<32x1xi32>
    %c0_i32 = arith.constant 0 : i32
    %60 = vector.broadcast %c0_i32 : i32 to vector<32x1xi32>
    %61 = arith.cmpi sgt, %59, %60 : vector<32x1xi32>
    %cst_26 = arith.constant 0.000000e+00 : f32
    %62 = vector.shape_cast %61 : vector<32x1xi1> to vector<32x1xi1>
    %63 = vector.broadcast %62 : vector<32x1xi1> to vector<32x64xi1>
    %64 = vector.broadcast %cst_26 : f32 to vector<32x64xf32>
    %65 = arith.select %63, %54, %64 : vector<32x64xi1>, vector<32x64xf32>
    %c15_i32_27 = arith.constant 15 : i32
    %66 = vector.broadcast %c15_i32_27 : i32 to vector<32x1xi32>
    %67 = arith.cmpi slt, %59, %66 : vector<32x1xi32>
    %cst_28 = arith.constant 0.000000e+00 : f32
    %68 = vector.shape_cast %67 : vector<32x1xi1> to vector<32x1xi1>
    %69 = vector.broadcast %68 : vector<32x1xi1> to vector<32x64xi1>
    %70 = vector.broadcast %cst_28 : f32 to vector<32x64xf32>
    %71 = arith.select %69, %56, %70 : vector<32x64xi1>, vector<32x64xf32>
    %72 = tpu.concatenate %65, %51, %71 in 1 : vector<32x64xf32>, vector<32x64xf32>, vector<32x64xf32> -> vector<32x192xf32>
    %73 = arith.truncf %72 : vector<32x192xf32> to vector<32x192xbf16>
    %cst_29 = arith.constant dense<0.000000e+00> : vector<32x64xf32>
    %74 = tpu.matmul %73, %1, %cst_29 {dimension_numbers = #tpu.dot_dimension_numbers<[1], [0], [0], [1], [0, 0, 1, 1], [], []>} : vector<32x192xbf16>, vector<192x64xbf16>, vector<32x64xf32> -> vector<32x64xf32>
    %cst_30 = arith.constant dense<0.000000e+00> : vector<64xf32>
    %75 = vector.multi_reduction <add>, %74, %cst_30 [0] : vector<32x64xf32> to vector<64xf32>
    %76 = vector.shape_cast %75 : vector<64xf32> to vector<1x64xf32>
    %77 = arith.mulf %74, %74 : vector<32x64xf32>
    %cst_31 = arith.constant dense<0.000000e+00> : vector<64xf32>
    %78 = vector.multi_reduction <add>, %77, %cst_31 [0] : vector<32x64xf32> to vector<64xf32>
    %79 = vector.shape_cast %78 : vector<64xf32> to vector<1x64xf32>
    %80 = tpu.concatenate %76, %79 in 0 : vector<1x64xf32>, vector<1x64xf32> -> vector<2x64xf32>
    %81 = arith.truncf %80 : vector<2x64xf32> to vector<2x64xbf16>
    %82 = arith.extf %81 : vector<2x64xbf16> to vector<2x64xf32>
    %83 = arith.subf %80, %82 : vector<2x64xf32>
    %84 = arith.truncf %83 : vector<2x64xf32> to vector<2x64xbf16>
    %85 = tpu.concatenate %81, %84 in 0 : vector<2x64xbf16>, vector<2x64xbf16> -> vector<4x64xbf16>
    %cst_32 = arith.constant dense<0.000000e+00> : vector<4x64xf32>
    %86 = tpu.matmul %85, %2, %cst_32 {dimension_numbers = #tpu.dot_dimension_numbers<[1], [0], [0], [1], [0, 0, 1, 1], [], []>} : vector<4x64xbf16>, vector<64x64xbf16>, vector<4x64xf32> -> vector<4x64xf32>
    %87 = vector.extract_strided_slice %86 {offsets = [0, 0], sizes = [1, 64], strides = [1, 1]} : vector<4x64xf32> to vector<1x64xf32>
    %88 = vector.extract_strided_slice %86 {offsets = [2, 0], sizes = [1, 64], strides = [1, 1]} : vector<4x64xf32> to vector<1x64xf32>
    %89 = arith.addf %87, %88 : vector<1x64xf32>
    %cst_33 = arith.constant 0.001953125 : f32
    %90 = vector.broadcast %cst_33 : f32 to vector<1x64xf32>
    %91 = arith.mulf %89, %90 : vector<1x64xf32>
    %92 = vector.extract_strided_slice %86 {offsets = [1, 0], sizes = [1, 64], strides = [1, 1]} : vector<4x64xf32> to vector<1x64xf32>
    %93 = vector.extract_strided_slice %86 {offsets = [3, 0], sizes = [1, 64], strides = [1, 1]} : vector<4x64xf32> to vector<1x64xf32>
    %94 = arith.addf %92, %93 : vector<1x64xf32>
    %cst_34 = arith.constant 0.001953125 : f32
    %95 = vector.broadcast %cst_34 : f32 to vector<1x64xf32>
    %96 = arith.mulf %94, %95 : vector<1x64xf32>
    %97 = arith.mulf %91, %91 : vector<1x64xf32>
    %98 = arith.subf %96, %97 : vector<1x64xf32>
    %cst_35 = arith.constant 0.000000e+00 : f32
    %99 = vector.broadcast %cst_35 : f32 to vector<1x64xf32>
    %100 = arith.maximumf %98, %99 : vector<1x64xf32>
    %cst_36 = arith.constant 9.99999974E-6 : f32
    %101 = vector.broadcast %cst_36 : f32 to vector<1x64xf32>
    %102 = arith.addf %100, %101 : vector<1x64xf32>
    %103 = math.rsqrt %102 : vector<1x64xf32>
    %104 = arith.mulf %103, %7 : vector<1x64xf32>
    %105 = vector.broadcast %91 : vector<1x64xf32> to vector<32x64xf32>
    %106 = arith.subf %74, %105 : vector<32x64xf32>
    %107 = vector.broadcast %104 : vector<1x64xf32> to vector<32x64xf32>
    %108 = arith.mulf %106, %107 : vector<32x64xf32>
    %109 = vector.broadcast %8 : vector<1x64xf32> to vector<32x64xf32>
    %110 = arith.addf %108, %109 : vector<32x64xf32>
    %cst_37 = arith.constant 0.000000e+00 : f32
    %111 = vector.broadcast %cst_37 : f32 to vector<32x64xf32>
    %112 = arith.maximumf %110, %111 : vector<32x64xf32>
    %113 = arith.truncf %112 : vector<32x64xf32> to vector<32x64xbf16>
    %cst_38 = arith.constant dense<0.000000e+00> : vector<32x256xf32>
    %114 = tpu.matmul %113, %3, %cst_38 {dimension_numbers = #tpu.dot_dimension_numbers<[1], [0], [0], [1], [0, 0, 1, 1], [], []>} : vector<32x64xbf16>, vector<64x256xbf16>, vector<32x256xf32> -> vector<32x256xf32>
    %cst_39 = arith.constant dense<0.000000e+00> : vector<256xf32>
    %115 = vector.multi_reduction <add>, %114, %cst_39 [0] : vector<32x256xf32> to vector<256xf32>
    %116 = vector.shape_cast %115 : vector<256xf32> to vector<1x256xf32>
    %117 = arith.mulf %114, %114 : vector<32x256xf32>
    %cst_40 = arith.constant dense<0.000000e+00> : vector<256xf32>
    %118 = vector.multi_reduction <add>, %117, %cst_40 [0] : vector<32x256xf32> to vector<256xf32>
    %119 = vector.shape_cast %118 : vector<256xf32> to vector<1x256xf32>
    %120 = tpu.concatenate %116, %119 in 0 : vector<1x256xf32>, vector<1x256xf32> -> vector<2x256xf32>
    %121 = arith.truncf %120 : vector<2x256xf32> to vector<2x256xbf16>
    %122 = arith.extf %121 : vector<2x256xbf16> to vector<2x256xf32>
    %123 = arith.subf %120, %122 : vector<2x256xf32>
    %124 = arith.truncf %123 : vector<2x256xf32> to vector<2x256xbf16>
    %125 = tpu.concatenate %121, %124 in 0 : vector<2x256xbf16>, vector<2x256xbf16> -> vector<4x256xbf16>
    %cst_41 = arith.constant dense<0.000000e+00> : vector<4x256xf32>
    %126 = tpu.matmul %125, %4, %cst_41 {dimension_numbers = #tpu.dot_dimension_numbers<[1], [0], [0], [1], [0, 0, 1, 1], [], []>} : vector<4x256xbf16>, vector<256x256xbf16>, vector<4x256xf32> -> vector<4x256xf32>
    %127 = vector.extract_strided_slice %126 {offsets = [0, 0], sizes = [1, 256], strides = [1, 1]} : vector<4x256xf32> to vector<1x256xf32>
    %128 = vector.extract_strided_slice %126 {offsets = [2, 0], sizes = [1, 256], strides = [1, 1]} : vector<4x256xf32> to vector<1x256xf32>
    %129 = arith.addf %127, %128 : vector<1x256xf32>
    %cst_42 = arith.constant 0.001953125 : f32
    %130 = vector.broadcast %cst_42 : f32 to vector<1x256xf32>
    %131 = arith.mulf %129, %130 : vector<1x256xf32>
    %132 = vector.extract_strided_slice %126 {offsets = [1, 0], sizes = [1, 256], strides = [1, 1]} : vector<4x256xf32> to vector<1x256xf32>
    %133 = vector.extract_strided_slice %126 {offsets = [3, 0], sizes = [1, 256], strides = [1, 1]} : vector<4x256xf32> to vector<1x256xf32>
    %134 = arith.addf %132, %133 : vector<1x256xf32>
    %cst_43 = arith.constant 0.001953125 : f32
    %135 = vector.broadcast %cst_43 : f32 to vector<1x256xf32>
    %136 = arith.mulf %134, %135 : vector<1x256xf32>
    %137 = arith.mulf %131, %131 : vector<1x256xf32>
    %138 = arith.subf %136, %137 : vector<1x256xf32>
    %cst_44 = arith.constant 0.000000e+00 : f32
    %139 = vector.broadcast %cst_44 : f32 to vector<1x256xf32>
    %140 = arith.maximumf %138, %139 : vector<1x256xf32>
    %cst_45 = arith.constant 9.99999974E-6 : f32
    %141 = vector.broadcast %cst_45 : f32 to vector<1x256xf32>
    %142 = arith.addf %140, %141 : vector<1x256xf32>
    %143 = math.rsqrt %142 : vector<1x256xf32>
    %144 = arith.mulf %143, %9 : vector<1x256xf32>
    %145 = vector.broadcast %131 : vector<1x256xf32> to vector<32x256xf32>
    %146 = arith.subf %114, %145 : vector<32x256xf32>
    %147 = vector.broadcast %144 : vector<1x256xf32> to vector<32x256xf32>
    %148 = arith.mulf %146, %147 : vector<32x256xf32>
    %149 = vector.broadcast %10 : vector<1x256xf32> to vector<32x256xf32>
    %150 = arith.addf %148, %149 : vector<32x256xf32>
    %151 = arith.addf %150, %11 : vector<32x256xf32>
    %cst_46 = arith.constant 0.000000e+00 : f32
    %152 = vector.broadcast %cst_46 : f32 to vector<32x256xf32>
    %153 = arith.maximumf %151, %152 : vector<32x256xf32>
    %c0_47 = arith.constant 0 : index
    %c0_48 = arith.constant 0 : index
    %154 = vector.load %arg5[%c0_47, %c0_48] : memref<32x256xf32, #tpu.memory_space<vmem>>, vector<32x256xf32>
    tpu.vector_store %arg5[%c0_47, %c0_48], %153 {strides = array<i32>} : memref<32x256xf32, #tpu.memory_space<vmem>>, vector<32x256xf32>,
    return
  }
}

</mosaic_0001>

<llo_original>
// kernel: tile.33
$region0: #{tile.33}
  #allocation0 [shape = 's32[1]{0}', space=sflag, size = 0x4, scoped, tag = 'scoped memory for tile.33']
  %s0 = inlined_call_operand.vmem [shape: f32[4], index: 0, kind: input, shape index: {}]
  %s1 = inlined_call_operand.vmem [shape: f32[16,4], index: 1, kind: output, shape index: {}]
  // Predicated region
  $region2: #{tile.33} parent=0 // pred_check
    _
  $region3: #{tile.33} parent=0 // pred_check_branch
    %3 = sbr.rel (0) target = $region5
  $region4: #{tile.33} parent=0 // pred_region
    _
  $region5: #{tile.33} parent=0 // pred_fallthru
    _
  %v4 = vld [vmem:[%s0] ss:$0 sm:$0xff]
  %5 = vst [vmem:[%s1] sm:$0xff] %v4
  %s6 = scalar_lea.vmem %s1, 8
  %7 = vst [vmem:[%s6] sm:$0xff] %v4

// kernel: tile.46
$region0: #{tile.46}
  %s0 = inlined_call_operand.vmem [shape: f32[16,4], index: 0, kind: input, shape index: {}]
  %s1 = inlined_call_operand.vmem [shape: f32[1,64], index: 1, kind: output, shape index: {}]
  $region1: #{tile.46} parent=0
    #allocation0 [shape = 'u8[4096]{0}', space=vmem, size = 0x1000, scoped, tag = 'scoped mem for output reshape']
    %v2 = vld [vmem:[%s0] sm:$0x1]
    %vm3 = vcmask 31744
    %4 = vst.msk [vmem:[#allocation0] sm:$0x1] %vm3, %v2
    %s5 = scalar_lea.vmem %s0, 15
    %v6 = vld [vmem:[%s5] sm:$0x1]
    %7 = vrot.lane.b32.xlu0 %v6, 60
    %v8 = vpop.permute.xlu0 %7
    %vm9 = vcmask 523744
    %10 = vst.msk [vmem:[#allocation0] sm:$0x1] %vm9, %v8
    %s11 = scalar_lea.vmem %s0, 14
    %v12 = vld [vmem:[%s11] sm:$0x1]
    %13 = vrot.lane.b32.xlu0 %v12, 56
    %v14 = vpop.permute.xlu0 %13
    %vm15 = vcmask 490944
    %16 = vst.msk [vmem:[#allocation0] sm:$0x1] %vm15, %v14
    %s17 = scalar_lea.vmem %s0, 13
    %v18 = vld [vmem:[%s17] sm:$0x1]
    %19 = vrot.lane.b32.xlu0 %v18, 52
    %v20 = vpop.permute.xlu0 %19
    %vm21 = vcmask 458144
    %22 = vst.msk [vmem:[#allocation0] sm:$0x1] %vm21, %v20
    %s23 = scalar_lea.vmem %s0, 12
    %v24 = vld [vmem:[%s23] sm:$0x1]
    %25 = vrot.lane.b32.xlu0 %v24, 48
    %v26 = vpop.permute.xlu0 %25
    %vm27 = vcmask 425344
    %28 = vst.msk [vmem:[#allocation0] sm:$0x1] %vm27, %v26
    %s29 = scalar_lea.vmem %s0, 11
    %v30 = vld [vmem:[%s29] sm:$0x1]
    %31 = vrot.lane.b32.xlu0 %v30, 44
    %v32 = vpop.permute.xlu0 %31
    %vm33 = vcmask 392544
    %34 = vst.msk [vmem:[#allocation0] sm:$0x1] %vm33, %v32
    %s35 = scalar_lea.vmem %s0, 10
    %v36 = vld [vmem:[%s35] sm:$0x1]
    %37 = vrot.lane.b32.xlu0 %v36, 40
    %v38 = vpop.permute.xlu0 %37
    %vm39 = vcmask 359744
    %40 = vst.msk [vmem:[#allocation0] sm:$0x1] %vm39, %v38
    %s41 = scalar_lea.vmem %s0, 9
    %v42 = vld [vmem:[%s41] sm:$0x1]
    %43 = vrot.lane.b32.xlu0 %v42, 36
    %v44 = vpop.permute.xlu0 %43
    %vm45 = vcmask 326944
    %46 = vst.msk [vmem:[#allocation0] sm:$0x1] %vm45, %v44
    %s47 = scalar_lea.vmem %s0, 8
    %v48 = vld [vmem:[%s47] sm:$0x1]
    %49 = vrot.lane.b32.xlu0 %v48, 32
    %v50 = vpop.permute.xlu0 %49
    %vm51 = vcmask 294144
    %52 = vst.msk [vmem:[#allocation0] sm:$0x1] %vm51, %v50
    %s53 = scalar_lea.vmem %s0, 7
    %v54 = vld [vmem:[%s53] sm:$0x1]
    %55 = vrot.lane.b32.xlu0 %v54, 28
    %v56 = vpop.permute.xlu0 %55
    %vm57 = vcmask 261344
    %58 = vst.msk [vmem:[#allocation0] sm:$0x1] %vm57, %v56
    %s59 = scalar_lea.vmem %s0, 6
    %v60 = vld [vmem:[%s59] sm:$0x1]
    %61 = vrot.lane.b32.xlu0 %v60, 24
    %v62 = vpop.permute.xlu0 %61
    %vm63 = vcmask 228544
    %64 = vst.msk [vmem:[#allocation0] sm:$0x1] %vm63, %v62
    %s65 = scalar_lea.vmem %s0, 5
    %v66 = vld [vmem:[%s65] sm:$0x1]
    %67 = vrot.lane.b32.xlu0 %v66, 20
    %v68 = vpop.permute.xlu0 %67
    %vm69 = vcmask 195744
    %70 = vst.msk [vmem:[#allocation0] sm:$0x1] %vm69, %v68
    %s71 = scalar_lea.vmem %s0, 4
    %v72 = vld [vmem:[%s71] sm:$0x1]
    %73 = vrot.lane.b32.xlu0 %v72, 16
    %v74 = vpop.permute.xlu0 %73
    %vm75 = vcmask 162944
    %76 = vst.msk [vmem:[#allocation0] sm:$0x1] %vm75, %v74
    %s77 = scalar_lea.vmem %s0, 3
    %v78 = vld [vmem:[%s77] sm:$0x1]
    %79 = vrot.lane.b32.xlu0 %v78, 12
    %v80 = vpop.permute.xlu0 %79
    %vm81 = vcmask 130144
    %82 = vst.msk [vmem:[#allocation0] sm:$0x1] %vm81, %v80
    %s83 = scalar_lea.vmem %s0, 2
    %v84 = vld [vmem:[%s83] sm:$0x1]
    %85 = vrot.lane.b32.xlu0 %v84, 8
    %v86 = vpop.permute.xlu0 %85
    %vm87 = vcmask 97344
    %88 = vst.msk [vmem:[#allocation0] sm:$0x1] %vm87, %v86
    %s89 = scalar_lea.vmem %s0, 1
    %v90 = vld [vmem:[%s89] sm:$0x1]
    %91 = vrot.lane.b32.xlu0 %v90, 4
    %v92 = vpop.permute.xlu0 %91
    %vm93 = vcmask 64544
    %94 = vst.msk [vmem:[#allocation0] sm:$0x1] %vm93, %v92
    %s96 = sshllo.u32 0, 1
    %v98 = vld [vmem:[#allocation0] sm:%s96]
    %s99 = sshllo.u32 0, 1
    %100 = vst [vmem:[%s1] sm:%s99] %v98

// kernel: tile.53
$region0: #{tile.53}
  #allocation0 [shape = 's32[1]{0}', space=sflag, size = 0x4, scoped, tag = 'scoped memory for tile.53']
  %s0 = inlined_call_operand.vmem [shape: f32[16], index: 0, kind: input, shape index: {}]
  %s1 = inlined_call_operand.vmem [shape: f32[16,16], index: 1, kind: output, shape index: {}]
  // Predicated region
  $region2: #{tile.53} parent=0 // pred_check
    _
  $region3: #{tile.53} parent=0 // pred_check_branch
    %3 = sbr.rel (0) target = $region5
  $region4: #{tile.53} parent=0 // pred_region
    _
  $region5: #{tile.53} parent=0 // pred_fallthru
    _
  %v4 = vld [vmem:[%s0] ss:$0 sm:$0xff]
  %5 = vst [vmem:[%s1] sm:$0xff] %v4
  %s6 = scalar_lea.vmem %s1, 8
  %7 = vst [vmem:[%s6] sm:$0xff] %v4

// kernel: tile.58
$region0: #{tile.58}
  %s0 = inlined_call_operand.vmem [shape: f32[16,16], index: 0, kind: input, shape index: {}]
  %s1 = inlined_call_operand.vmem [shape: f32[1,256], index: 1, kind: output, shape index: {}]
  $region1: #{tile.58} parent=0
    #allocation0 [shape = 'u8[8192]{0}', space=vmem, size = 0x2000, scoped, tag = 'scoped mem for output reshape']
    %s2 = smov 3
    %v3 = vld [vmem:[%s0] ss:$8 sm:%s2]
    %vm4 = vcmask 130048
    %5 = vst.msk [vmem:[#allocation0] ss:$8 sm:$0x3] %vm4, %v3
    %s6 = scalar_lea.vmem %s0, 7
    %s7 = smov 3
    %v8 = vld [vmem:[%s6] ss:$8 sm:%s7]
    %9 = vrot.lane.b32.xlu0 %v8, 112
    %v10 = vpop.permute.xlu0 %9
    %vm11 = vcmask 1048448
    %12 = vst.msk [vmem:[#allocation0] ss:$8 sm:$0x3] %vm11, %v10
    %s13 = scalar_lea.vmem %s0, 6
    %s14 = smov 3
    %v15 = vld [vmem:[%s13] ss:$8 sm:%s14]
    %16 = vrot.lane.b32.xlu0 %v15, 96
    %v17 = vpop.permute.xlu0 %16
    %vm18 = vcmask 917248
    %19 = vst.msk [vmem:[#allocation0] ss:$8 sm:$0x3] %vm18, %v17
    %s20 = scalar_lea.vmem %s0, 5
    %s21 = smov 3
    %v22 = vld [vmem:[%s20] ss:$8 sm:%s21]
    %23 = vrot.lane.b32.xlu0 %v22, 80
    %v24 = vpop.permute.xlu0 %23
    %vm25 = vcmask 786048
    %26 = vst.msk [vmem:[#allocation0] ss:$8 sm:$0x3] %vm25, %v24
    %s27 = scalar_lea.vmem %s0, 4
    %s28 = smov 3
    %v29 = vld [vmem:[%s27] ss:$8 sm:%s28]
    %30 = vrot.lane.b32.xlu0 %v29, 64
    %v31 = vpop.permute.xlu0 %30
    %vm32 = vcmask 654848
    %33 = vst.msk [vmem:[#allocation0] ss:$8 sm:$0x3] %vm32, %v31
    %s34 = scalar_lea.vmem %s0, 3
    %s35 = smov 3
    %v36 = vld [vmem:[%s34] ss:$8 sm:%s35]
    %37 = vrot.lane.b32.xlu0 %v36, 48
    %v38 = vpop.permute.xlu0 %37
    %vm39 = vcmask 523648
    %40 = vst.msk [vmem:[#allocation0] ss:$8 sm:$0x3] %vm39, %v38
    %s41 = scalar_lea.vmem %s0, 2
    %s42 = smov 3
    %v43 = vld [vmem:[%s41] ss:$8 sm:%s42]
    %44 = vrot.lane.b32.xlu0 %v43, 32
    %v45 = vpop.permute.xlu0 %44
    %vm46 = vcmask 392448
    %47 = vst.msk [vmem:[#allocation0] ss:$8 sm:$0x3] %vm46, %v45
    %s48 = scalar_lea.vmem %s0, 1
    %s49 = smov 3
    %v50 = vld [vmem:[%s48] ss:$8 sm:%s49]
    %51 = vrot.lane.b32.xlu0 %v50, 16
    %v52 = vpop.permute.xlu0 %51
    %vm53 = vcmask 261248
    %54 = vst.msk [vmem:[#allocation0] ss:$8 sm:$0x3] %vm53, %v52
    %s56 = sshllo.u32 0, 1
    %v58 = vld [vmem:[#allocation0] sm:%s56]
    %s59 = sshllo.u32 0, 1
    %60 = vst [vmem:[%s1] sm:%s59] %v58
    %s61 = scalar_lea.vmem [#allocation0], 8
    %v62 = vld [vmem:[%s61] sm:%s56]
    %s63 = sshllo.u32 0, 1
    %s64 = scalar_lea.vmem %s1, 1
    %65 = vst [vmem:[%s64] sm:%s63] %v62

// kernel: bottleneck_pallas.1
$region0: #{bottleneck_pallas.1}
  #allocation0 [shape = 'u32[]', space=smem, size = 0x4, offset = 0x4, fixed_abs, tag = 'smem constant byte address 0x4 - core index']
  #allocation1 [shape = 'u32[144,128]{1,0:T(1,128)}', space=vmem, size = 0x12000, scoped, tag = 'internal scratch']
  %s0 = inlined_call_operand.vmem [shape: f32[32,256], index: 0, kind: input, shape index: {}]
  %s1 = inlined_call_operand.vmem [shape: bf16[512,64], index: 1, kind: input, shape index: {}]
  %s2 = inlined_call_operand.vmem [shape: bf16[320,256], index: 2, kind: input, shape index: {}]
  %s3 = inlined_call_operand.vmem [shape: f32[4,64], index: 3, kind: input, shape index: {}]
  %s4 = inlined_call_operand.vmem [shape: f32[2,256], index: 4, kind: input, shape index: {}]
  %s5 = inlined_call_operand.vmem [shape: f32[32,256], index: 5, kind: output, shape index: {}]
  %s6 = sld [smem:[#allocation0]]
  $region30: #{bottleneck_pallas.1} parent=0
    _
  %s8 = ssub.s32 1, %s6
  %s9 = scalar_select 0, %s8, %s6
  // Predicated region
  $region2: #{bottleneck_pallas.1} parent=0 // pred_check
    _
  $region3: #{bottleneck_pallas.1} parent=0 // pred_check_branch
    %11 = sbr.rel (0) target = $region5
  $region4: #{bottleneck_pallas.1} parent=0 // pred_region
    _
  $region5: #{bottleneck_pallas.1} parent=0 // pred_fallthru
    _
  // Predicated region
  $region6: #{bottleneck_pallas.1} parent=0 // pred_check
    _
  $region7: #{bottleneck_pallas.1} parent=0 // pred_check_branch
    %13 = sbr.rel (0) target = $region9
  $region8: #{bottleneck_pallas.1} parent=0 // pred_region
    _
  $region9: #{bottleneck_pallas.1} parent=0 // pred_fallthru
    _
  // Predicated region
  $region10: #{bottleneck_pallas.1} parent=0 // pred_check
    _
  $region11: #{bottleneck_pallas.1} parent=0 // pred_check_branch
    %15 = sbr.rel (0) target = $region13
  $region12: #{bottleneck_pallas.1} parent=0 // pred_region
    _
  $region13: #{bottleneck_pallas.1} parent=0 // pred_fallthru
    _
  // Predicated region
  $region14: #{bottleneck_pallas.1} parent=0 // pred_check
    _
  $region15: #{bottleneck_pallas.1} parent=0 // pred_check_branch
    %17 = sbr.rel (0) target = $region17
  $region16: #{bottleneck_pallas.1} parent=0 // pred_region
    _
  $region17: #{bottleneck_pallas.1} parent=0 // pred_fallthru
    _
  // Predicated region
  $region18: #{bottleneck_pallas.1} parent=0 // pred_check
    _
  $region19: #{bottleneck_pallas.1} parent=0 // pred_check_branch
    %19 = sbr.rel (0) target = $region21
  $region20: #{bottleneck_pallas.1} parent=0 // pred_region
    _
  $region21: #{bottleneck_pallas.1} parent=0 // pred_fallthru
    _
  %v21 = vld [vmem:[%s1] sm:$0xf]
  %v22 = vld [vmem:[%s1 + $0x4] sm:$0xf]
  %v23 = vld [vmem:[%s1 + $0x8] sm:$0xf]
  %v24 = vld [vmem:[%s1 + $0xc] sm:$0xf]
  %v25 = vld [vmem:[%s1 + $0x10] sm:$0xf]
  %v26 = vld [vmem:[%s1 + $0x14] sm:$0xf]
  %v27 = vld [vmem:[%s1 + $0x18] sm:$0xf]
  %v28 = vld [vmem:[%s1 + $0x1c] sm:$0xf]
  %v29 = vld [vmem:[%s1 + $0x20] sm:$0xf]
  %v30 = vld [vmem:[%s1 + $0x24] sm:$0xf]
  %v31 = vld [vmem:[%s1 + $0x28] sm:$0xf]
  %v32 = vld [vmem:[%s1 + $0x2c] sm:$0xf]
  %v33 = vld [vmem:[%s1 + $0x30] sm:$0xf]
  %v34 = vld [vmem:[%s1 + $0x34] sm:$0xf]
  %v35 = vld [vmem:[%s1 + $0x38] sm:$0xf]
  %v36 = vld [vmem:[%s1 + $0x3c] sm:$0xf]
  %v37 = vld [vmem:[%s1 + $0x40] sm:$0xf]
  %v38 = vld [vmem:[%s1 + $0x44] sm:$0xf]
  %v39 = vld [vmem:[%s1 + $0x48] sm:$0xf]
  %v40 = vld [vmem:[%s1 + $0x4c] sm:$0xf]
  %v41 = vld [vmem:[%s1 + $0x50] sm:$0xf]
  %v42 = vld [vmem:[%s1 + $0x54] sm:$0xf]
  %v43 = vld [vmem:[%s1 + $0x58] sm:$0xf]
  %v44 = vld [vmem:[%s1 + $0x5c] sm:$0xf]
  %v45 = vld [vmem:[%s1 + $0x60] sm:$0xf]
  %v46 = vld [vmem:[%s1 + $0x64] sm:$0xf]
  %v47 = vld [vmem:[%s1 + $0x68] sm:$0xf]
  %v48 = vld [vmem:[%s1 + $0x6c] sm:$0xf]
  %v49 = vld [vmem:[%s1 + $0x70] sm:$0xf]
  %v50 = vld [vmem:[%s1 + $0x74] sm:$0xf]
  %v51 = vld [vmem:[%s1 + $0x78] sm:$0xf]
  %v52 = vld [vmem:[%s1 + $0x7c] sm:$0xf]
  %v53 = vld [vmem:[%s1 + $0x80] sm:$0xf]
  %v54 = vld [vmem:[%s1 + $0x84] sm:$0xf]
  %v55 = vld [vmem:[%s1 + $0x88] sm:$0xf]
  %v56 = vld [vmem:[%s1 + $0x8c] sm:$0xf]
  %v57 = vld [vmem:[%s1 + $0x90] sm:$0xf]
  %v58 = vld [vmem:[%s1 + $0x94] sm:$0xf]
  %v59 = vld [vmem:[%s1 + $0x98] sm:$0xf]
  %v60 = vld [vmem:[%s1 + $0x9c] sm:$0xf]
  %v61 = vld [vmem:[%s1 + $0xa0] sm:$0xf]
  %v62 = vld [vmem:[%s1 + $0xa4] sm:$0xf]
  %v63 = vld [vmem:[%s1 + $0xa8] sm:$0xf]
  %v64 = vld [vmem:[%s1 + $0xac] sm:$0xf]
  %v65 = vld [vmem:[%s1 + $0xb0] sm:$0xf]
  %v66 = vld [vmem:[%s1 + $0xb4] sm:$0xf]
  %v67 = vld [vmem:[%s1 + $0xb8] sm:$0xf]
  %v68 = vld [vmem:[%s1 + $0xbc] sm:$0xf]
  %v69 = vld [vmem:[%s1 + $0xc0] sm:$0xf]
  %v70 = vld [vmem:[%s1 + $0xc4] sm:$0xf]
  %v71 = vld [vmem:[%s1 + $0xc8] sm:$0xf]
  %v72 = vld [vmem:[%s1 + $0xcc] sm:$0xf]
  %v73 = vld [vmem:[%s1 + $0xd0] sm:$0xf]
  %v74 = vld [vmem:[%s1 + $0xd4] sm:$0xf]
  %v75 = vld [vmem:[%s1 + $0xd8] sm:$0xf]
  %v76 = vld [vmem:[%s1 + $0xdc] sm:$0xf]
  %v77 = vld [vmem:[%s1 + $0xe0] sm:$0xf]
  %v78 = vld [vmem:[%s1 + $0xe4] sm:$0xf]
  %v79 = vld [vmem:[%s1 + $0xe8] sm:$0xf]
  %v80 = vld [vmem:[%s1 + $0xec] sm:$0xf]
  %v81 = vld [vmem:[%s1 + $0xf0] sm:$0xf]
  %v82 = vld [vmem:[%s1 + $0xf4] sm:$0xf]
  %v83 = vld [vmem:[%s1 + $0xf8] sm:$0xf]
  %v84 = vld [vmem:[%s1 + $0xfc] sm:$0xf]
  %v85 = vld [vmem:[%s2] sm:$0xff]
  %v86 = vld [vmem:[%s2 + $0x8] sm:$0xff]
  %v87 = vld [vmem:[%s2 + $0x10] sm:$0xff]
  %v88 = vld [vmem:[%s2 + $0x18] sm:$0xff]
  %v89 = vld [vmem:[%s2 + $0x20] sm:$0xff]
  %v90 = vld [vmem:[%s2 + $0x28] sm:$0xff]
  %v91 = vld [vmem:[%s2 + $0x30] sm:$0xff]
  %v92 = vld [vmem:[%s2 + $0x38] sm:$0xff]
  %v93 = vld [vmem:[%s2 + $0x40] sm:$0xff]
  %v94 = vld [vmem:[%s2 + $0x48] sm:$0xff]
  %v95 = vld [vmem:[%s2 + $0x50] sm:$0xff]
  %v96 = vld [vmem:[%s2 + $0x58] sm:$0xff]
  %v97 = vld [vmem:[%s2 + $0x60] sm:$0xff]
  %v98 = vld [vmem:[%s2 + $0x68] sm:$0xff]
  %v99 = vld [vmem:[%s2 + $0x70] sm:$0xff]
  %v100 = vld [vmem:[%s2 + $0x78] sm:$0xff]
  %v101 = vld [vmem:[%s2 + $0x80] sm:$0xff]
  %v102 = vld [vmem:[%s2 + $0x88] sm:$0xff]
  %v103 = vld [vmem:[%s2 + $0x90] sm:$0xff]
  %v104 = vld [vmem:[%s2 + $0x98] sm:$0xff]
  %v105 = vld [vmem:[%s2 + $0xa0] sm:$0xff]
  %v106 = vld [vmem:[%s2 + $0xa8] sm:$0xff]
  %v107 = vld [vmem:[%s2 + $0xb0] sm:$0xff]
  %v108 = vld [vmem:[%s2 + $0xb8] sm:$0xff]
  %v109 = vld [vmem:[%s2 + $0xc0] sm:$0xff]
  %v110 = vld [vmem:[%s2 + $0xc8] sm:$0xff]
  %v111 = vld [vmem:[%s2 + $0xd0] sm:$0xff]
  %v112 = vld [vmem:[%s2 + $0xd8] sm:$0xff]
  %v113 = vld [vmem:[%s2 + $0xe0] sm:$0xff]
  %v114 = vld [vmem:[%s2 + $0xe8] sm:$0xff]
  %v115 = vld [vmem:[%s2 + $0xf0] sm:$0xff]
  %v116 = vld [vmem:[%s2 + $0xf8] sm:$0xff]
  %v117 = vld [vmem:[%s2 + $0x100] sm:$0xff]
  %v118 = vld [vmem:[%s2 + $0x108] sm:$0xff]
  %v119 = vld [vmem:[%s2 + $0x110] sm:$0xff]
  %v120 = vld [vmem:[%s2 + $0x118] sm:$0xff]
  %v121 = vld [vmem:[%s2 + $0x120] sm:$0xff]
  %v122 = vld [vmem:[%s2 + $0x128] sm:$0xff]
  %v123 = vld [vmem:[%s2 + $0x130] sm:$0xff]
  %v124 = vld [vmem:[%s2 + $0x138] sm:$0xff]
  %v125 = vld [vmem:[%s3] sm:$0x1]
  %v126 = vld [vmem:[%s3 + $0x1] sm:$0x1]
  %v127 = vld [vmem:[%s3 + $0x2] sm:$0x1]
  %v128 = vld [vmem:[%s3 + $0x3] sm:$0x1]
  %v129 = vld [vmem:[%s4] ss:$2 sm:$0x3]
  %s130 = scalar_lea.vmem %s4, 1
  %v131 = vld [vmem:[%s130] ss:$2 sm:$0x3]
  %v132 = vld [vmem:[%s0] sm:$0xff]
  %v133 = vld [vmem:[%s0 + $0x8] sm:$0xff]
  %v134 = vld [vmem:[%s0 + $0x10] sm:$0xff]
  %v135 = vld [vmem:[%s0 + $0x18] sm:$0xff]
  %v136 = vld [vmem:[%s0 + $0x20] sm:$0xff]
  %v137 = vld [vmem:[%s0 + $0x28] sm:$0xff]
  %v138 = vld [vmem:[%s0 + $0x30] sm:$0xff]
  %v139 = vld [vmem:[%s0 + $0x38] sm:$0xff]
  %v140 = vpack.c.bf16 %v134, %v132
  %v141 = vpack.c.bf16 %v135, %v133
  %v142 = vpack.c.bf16 %v138, %v136
  %v143 = vpack.c.bf16 %v139, %v137
  %v176 = vunpack.c.l.b16 %v21
  %v177 = vunpack.c.l.b16 %v22
  %v178 = vunpack.c.l.b16 %v23
  %v179 = vunpack.c.l.b16 %v24
  %v180 = vunpack.c.l.b16 %v25
  %v181 = vunpack.c.l.b16 %v26
  %v182 = vunpack.c.l.b16 %v27
  %v183 = vunpack.c.l.b16 %v28
  %v184 = vunpack.c.l.b16 %v29
  %v185 = vunpack.c.l.b16 %v30
  %v186 = vunpack.c.l.b16 %v31
  %v187 = vunpack.c.l.b16 %v32
  %v188 = vunpack.c.l.b16 %v33
  %v189 = vunpack.c.l.b16 %v34
  %v190 = vunpack.c.l.b16 %v35
  %v191 = vunpack.c.l.b16 %v36
  %v192 = vunpack.c.l.b16 %v37
  %v193 = vunpack.c.l.b16 %v38
  %v194 = vunpack.c.l.b16 %v39
  %v195 = vunpack.c.l.b16 %v40
  %v196 = vunpack.c.l.b16 %v41
  %v197 = vunpack.c.l.b16 %v42
  %v198 = vunpack.c.l.b16 %v43
  %v199 = vunpack.c.l.b16 %v44
  %v200 = vunpack.c.l.b16 %v45
  %v201 = vunpack.c.l.b16 %v46
  %v202 = vunpack.c.l.b16 %v47
  %v203 = vunpack.c.l.b16 %v48
  %v204 = vunpack.c.l.b16 %v49
  %v205 = vunpack.c.l.b16 %v50
  %v206 = vunpack.c.l.b16 %v51
  %v207 = vunpack.c.l.b16 %v52
  %v208 = vpack.c.b16 %v177, %v176
  %v209 = vpack.c.b16 %v179, %v178
  %v210 = vpack.c.b16 %v181, %v180
  %v211 = vpack.c.b16 %v183, %v182
  %v212 = vpack.c.b16 %v185, %v184
  %v213 = vpack.c.b16 %v187, %v186
  %v214 = vpack.c.b16 %v189, %v188
  %v215 = vpack.c.b16 %v191, %v190
  %v216 = vpack.c.b16 %v193, %v192
  %v217 = vpack.c.b16 %v195, %v194
  %v218 = vpack.c.b16 %v197, %v196
  %v219 = vpack.c.b16 %v199, %v198
  %v220 = vpack.c.b16 %v201, %v200
  %v221 = vpack.c.b16 %v203, %v202
  %v222 = vpack.c.b16 %v205, %v204
  %v223 = vpack.c.b16 %v207, %v206
  %240 = vmatprep.subr.bf16.mxu0 0
  %241 = vmatpush1.bf16.msra.mxu0 %v208
  %242 = vmatprep.subr.bf16.mxu0 0
  %243 = vmatpush1.bf16.msra.mxu0 %v209
  %244 = vmatprep.subr.bf16.mxu0 0
  %245 = vmatpush1.bf16.msra.mxu0 %v210
  %246 = vmatprep.subr.bf16.mxu0 0
  %247 = vmatpush1.bf16.msra.mxu0 %v211
  %248 = vmatprep.subr.bf16.mxu0 0
  %249 = vmatpush1.bf16.msra.mxu0 %v212
  %250 = vmatprep.subr.bf16.mxu0 0
  %251 = vmatpush1.bf16.msra.mxu0 %v213
  %252 = vmatprep.subr.bf16.mxu0 0
  %253 = vmatpush1.bf16.msra.mxu0 %v214
  %254 = vmatprep.subr.bf16.mxu0 0
  %255 = vmatpush1.bf16.msra.mxu0 %v215
  %256 = vmatprep.subr.bf16.mxu0 0
  %257 = vmatpush1.bf16.msra.mxu0 %v216
  %258 = vmatprep.subr.bf16.mxu0 0
  %259 = vmatpush1.bf16.msra.mxu0 %v217
  %260 = vmatprep.subr.bf16.mxu0 0
  %261 = vmatpush1.bf16.msra.mxu0 %v218
  %262 = vmatprep.subr.bf16.mxu0 0
  %263 = vmatpush1.bf16.msra.mxu0 %v219
  %264 = vmatprep.subr.bf16.mxu0 0
  %265 = vmatpush1.bf16.msra.mxu0 %v220
  %266 = vmatprep.subr.bf16.mxu0 0
  %267 = vmatpush1.bf16.msra.mxu0 %v221
  %268 = vmatprep.subr.bf16.mxu0 0
  %269 = vmatpush1.bf16.msra.mxu0 %v222
  %270 = vmatprep.subr.bf16.mxu0 0
  %271 = vmatpush1.bf16.msra.mxu0 %v223
  %272 = vmatprep.mubr.bf16.mxu0 %v141
  %273 = vmatmul.mubr.bf16.gmra.mrb[0].mxu0 %v140
  %v274 = vpop.f32.mrb[0].mxu0
  %v275 = vadd.f32 0.0, %v274
  %v276 = vpop.f32.mrb[0].mxu0
  %v277 = vpop.f32.mrb[0].mxu0
  %v278 = vadd.f32 0.0, %v277
  %v279 = vpop.f32.mrb[0].mxu0
  %280 = vmatprep.mubr.bf16.mxu0 %v143
  %281 = vmatmul.mubr.bf16.gmra.mrb[0].mxu0 %v142
  %v282 = vpop.f32.mrb[0].mxu0
  %v283 = vadd.f32 0.0, %v282
  %v284 = vpop.f32.mrb[0].mxu0
  %v285 = vpop.f32.mrb[0].mxu0
  %v286 = vadd.f32 0.0, %v285
  %v287 = vpop.f32.mrb[0].mxu0
  %288 = vdwg.mxu0
  %vm289 = vcmask 523264
  %v290 = vsel %vm289, %v275, 0.0
  %v291 = vsel %vm289, %v278, 0.0
  %v292 = vadd.f32 %v290, %v291
  %v293 = vsel %vm289, %v283, 0.0
  %v294 = vadd.f32 %v292, %v293
  %v295 = vsel %vm289, %v286, 0.0
  %v296 = vadd.f32 %v294, %v295
  %v297 = vrot.slane %v296, 4
  %v298 = vadd.f32 %v296, %v297
  %v299 = vrot.slane %v298, 2
  %v300 = vadd.f32 %v298, %v299
  %v301 = vrot.slane %v300, 1
  %v302 = vadd.f32 %v300, %v301
  %v303 = vmul.f32 %v275, %v275
  %v304 = vmul.f32 %v278, %v278
  %v305 = vmul.f32 %v283, %v283
  %v306 = vmul.f32 %v286, %v286
  %v307 = vsel %vm289, %v303, 0.0
  %v308 = vsel %vm289, %v304, 0.0
  %v309 = vadd.f32 %v307, %v308
  %v310 = vsel %vm289, %v305, 0.0
  %v311 = vadd.f32 %v309, %v310
  %v312 = vsel %vm289, %v306, 0.0
  %v313 = vadd.f32 %v311, %v312
  %v314 = vrot.slane %v313, 4
  %v315 = vadd.f32 %v313, %v314
  %v316 = vrot.slane %v315, 2
  %v317 = vadd.f32 %v315, %v316
  %v318 = vrot.slane %v317, 1
  %v319 = vadd.f32 %v317, %v318
  %vm320 = vcmask 1040384
  %v321 = vsel %vm320, %v302, %v319
  %v322 = vpack.c.bf16 %v321, %v321
  %v323 = vunpack.c.l.bf16 %v322
  %v324 = vsub.f32 %v321, %v323
  %v325 = vpack.c.bf16 %v324, %v324
  %v327 = vrot.slane %v325, 7
  %v330 = vsel %vm320, %v322, %v327
  %v339 = vunpack.c.l.b16 %v77
  %v340 = vunpack.c.l.b16 %v78
  %v341 = vunpack.c.l.b16 %v79
  %v342 = vunpack.c.l.b16 %v80
  %v343 = vunpack.c.l.b16 %v81
  %v344 = vunpack.c.l.b16 %v82
  %v345 = vunpack.c.l.b16 %v83
  %v346 = vunpack.c.l.b16 %v84
  %v347 = vpack.c.b16 %v340, %v339
  %v348 = vpack.c.b16 %v342, %v341
  %v349 = vpack.c.b16 %v344, %v343
  %v350 = vpack.c.b16 %v346, %v345
  %v355 = vsel %vm289, %v330, 0
  %357 = vmatprep.subr.bf16.mxu0 0
  %358 = vmatpush1.bf16.msra.mxu0 %v347
  %359 = vmatprep.subr.bf16.mxu0 0
  %360 = vmatpush1.bf16.msra.mxu0 %v348
  %361 = vmatprep.subr.bf16.mxu0 0
  %362 = vmatpush1.bf16.msra.mxu0 %v349
  %363 = vmatprep.subr.bf16.mxu0 0
  %364 = vmatpush1.bf16.msra.mxu0 %v350
  %365 = vmatprep.subr.bf16.mxu0 0
  %366 = vmatpush1.bf16.msra.mxu0 0
  %367 = vmatprep.subr.bf16.mxu0 0
  %368 = vmatpush1.bf16.msra.mxu0 0
  %369 = vmatprep.subr.bf16.mxu0 0
  %370 = vmatpush1.bf16.msra.mxu0 0
  %371 = vmatprep.subr.bf16.mxu0 0
  %372 = vmatpush1.bf16.msra.mxu0 0
  %373 = vmatprep.subr.bf16.mxu0 0
  %374 = vmatpush1.bf16.msra.mxu0 0
  %375 = vmatprep.subr.bf16.mxu0 0
  %376 = vmatpush1.bf16.msra.mxu0 0
  %377 = vmatprep.subr.bf16.mxu0 0
  %378 = vmatpush1.bf16.msra.mxu0 0
  %379 = vmatprep.subr.bf16.mxu0 0
  %380 = vmatpush1.bf16.msra.mxu0 0
  %381 = vmatprep.subr.bf16.mxu0 0
  %382 = vmatpush1.bf16.msra.mxu0 0
  %383 = vmatprep.subr.bf16.mxu0 0
  %384 = vmatpush1.bf16.msra.mxu0 0
  %385 = vmatprep.subr.bf16.mxu0 0
  %386 = vmatpush1.bf16.msra.mxu0 0
  %387 = vmatprep.subr.bf16.mxu0 0
  %388 = vmatpush1.bf16.msra.mxu0 0
  %389 = vmatprep.mubr.bf16.mxu0 0
  %390 = vmatmul.mubr.bf16.gmra.mrb[0].mxu0 %v355
  %v391 = vpop.f32.mrb[0].mxu0
  %v392 = vadd.f32 0.0, %v391
  %v393 = vpop.f32.mrb[0].mxu0
  %v394 = vpop.f32.mrb[0].mxu0
  %v395 = vpop.f32.mrb[0].mxu0
  %396 = vdwg.mxu0
  %v398 = vrot.slane %v392, 2
  %v400 = vadd.f32 %v392, %v398
  %v401 = vmul.f32 %v400, 0.001953125
  %v402 = vmul.f32 %v401, %v401
  %v404 = vrot.slane %v402, 7
  %v406 = vsub.f32 %v401, %v404
  %v407 = vmax.f32 %v406, 0.0
  %v408 = vadd.f32 %v407, 1e-05
  %v409 = vrsqrt.pop %v408
  %v411 = vrot.slane %v125, 7
  %v413 = vmul.f32 %v409, %v411
  %v414 = vlaneseq
  %v415 = vshrl.u32 %v414, 7
  %v416 = vsub.s32 0, %v415
  %v417 = vrot.slane %v401, %v416
  %v418 = vsub.f32 %v275, %v417
  %v419 = vsub.f32 %v278, %v417
  %v420 = vsub.f32 %v283, %v417
  %v421 = vsub.f32 %v286, %v417
  %v422 = vlaneseq
  %v423 = vshrl.u32 %v422, 7
  %v424 = vsub.s32 1, %v423
  %v425 = vrot.slane %v413, %v424
  %v426 = vmul.f32 %v418, %v425
  %v427 = vmul.f32 %v419, %v425
  %v428 = vmul.f32 %v420, %v425
  %v429 = vmul.f32 %v421, %v425
  %v430 = vlaneseq
  %v431 = vshrl.u32 %v430, 7
  %v432 = vsub.s32 0, %v431
  %v433 = vrot.slane %v126, %v432
  %v434 = vadd.f32 %v426, %v433
  %v435 = vadd.f32 %v427, %v433
  %v436 = vadd.f32 %v428, %v433
  %v437 = vadd.f32 %v429, %v433
  %v438 = vmax.f32 %v434, 0.0
  %v439 = vmax.f32 %v435, 0.0
  %v440 = vmax.f32 %v436, 0.0
  %v441 = vmax.f32 %v437, 0.0
  %v446 = vrot.slane %v438, 7
  %v447 = vrot.slane %v439, 7
  %v448 = vsel %vm320, %v446, %v447
  %v449 = vrot.slane %v440, 7
  %v450 = vsel %vm320, %v447, %v449
  %v451 = vrot.slane %v441, 7
  %v452 = vsel %vm320, %v449, %v451
  %v457 = vsel %vm320, 0.0, %v446
  %vm458 = vcmask 1046528
  %v459 = vrot.slane %v438, 1
  %v460 = vrot.slane %v439, 1
  %v461 = vsel %vm458, %v459, %v460
  %v462 = vrot.slane %v440, 1
  %v463 = vsel %vm458, %v460, %v462
  %v464 = vrot.slane %v441, 1
  %v465 = vsel %vm458, %v462, %v464
  %v470 = vsel %vm458, %v464, 0.0
  %v471 = vlaneseq
  %v472 = vshrl.u32 %v471, 7
  %v473 = vadd.s32 %v472, 8
  %v474 = vadd.s32 %v472, 16
  %v475 = vadd.s32 %v472, 24
  %v476 = vand.u32 %v472, 15
  %v477 = vand.u32 %v473, 15
  %v478 = vand.u32 %v474, 15
  %v479 = vand.u32 %v475, 15
  %vm480 = vcmp.gt.s32.totalorder %v476, 0
  %vm481 = vcmp.gt.s32.totalorder %v477, 0
  %vm482 = vcmp.gt.s32.totalorder %v478, 0
  %vm483 = vcmp.gt.s32.totalorder %v479, 0
  %v484 = vsel %vm480, 1, 0
  %v485 = vsel %vm481, 1, 0
  %v486 = vsel %vm482, 1, 0
  %v487 = vsel %vm483, 1, 0
  %vm488 = vcmp.eq.s32.totalorder %v484, 1
  %vm489 = vcmp.eq.s32.totalorder %v485, 1
  %vm490 = vcmp.eq.s32.totalorder %v486, 1
  %vm491 = vcmp.eq.s32.totalorder %v487, 1
  %v492 = vsel %vm488, %v457, 0.0
  %v493 = vsel %vm489, %v448, 0.0
  %v494 = vsel %vm490, %v450, 0.0
  %v495 = vsel %vm491, %v452, 0.0
  %vm496 = vcmp.lt.s32.totalorder %v476, 15
  %vm497 = vcmp.lt.s32.totalorder %v477, 15
  %vm498 = vcmp.lt.s32.totalorder %v478, 15
  %vm499 = vcmp.lt.s32.totalorder %v479, 15
  %v500 = vsel %vm496, 1, 0
  %v501 = vsel %vm497, 1, 0
  %v502 = vsel %vm498, 1, 0
  %v503 = vsel %vm499, 1, 0
  %vm504 = vcmp.eq.s32.totalorder %v500, 1
  %vm505 = vcmp.eq.s32.totalorder %v501, 1
  %vm506 = vcmp.eq.s32.totalorder %v502, 1
  %vm507 = vcmp.eq.s32.totalorder %v503, 1
  %v508 = vsel %vm504, %v461, 0.0
  %v509 = vsel %vm505, %v463, 0.0
  %v510 = vsel %vm506, %v465, 0.0
  %v511 = vsel %vm507, %v470, 0.0
  %512 = vrot.lane.b32.xlu0 %v438, 64
  %v513 = vpop.permute.xlu0 %512
  %514 = vrot.lane.b32.xlu0 %v439, 64
  %v515 = vpop.permute.xlu0 %514
  %516 = vrot.lane.b32.xlu0 %v440, 64
  %v517 = vpop.permute.xlu0 %516
  %518 = vrot.lane.b32.xlu0 %v441, 64
  %v519 = vpop.permute.xlu0 %518
  %v524 = vsel %vm289, %v492, %v513
  %v525 = vsel %vm289, %v493, %v515
  %v526 = vsel %vm289, %v494, %v517
  %v527 = vsel %vm289, %v495, %v519
  %v528 = vpack.c.bf16 %v525, %v524
  %v529 = vpack.c.bf16 %v509, %v508
  %v530 = vpack.c.bf16 %v527, %v526
  %v531 = vpack.c.bf16 %v511, %v510
  %v556 = vunpack.c.l.b16 %v53
  %v557 = vunpack.c.l.b16 %v54
  %v558 = vunpack.c.l.b16 %v55
  %v559 = vunpack.c.l.b16 %v56
  %v560 = vunpack.c.l.b16 %v57
  %v561 = vunpack.c.l.b16 %v58
  %v562 = vunpack.c.l.b16 %v59
  %v563 = vunpack.c.l.b16 %v60
  %v564 = vunpack.c.l.b16 %v61
  %v565 = vunpack.c.l.b16 %v62
  %v566 = vunpack.c.l.b16 %v63
  %v567 = vunpack.c.l.b16 %v64
  %v568 = vunpack.c.l.b16 %v65
  %v569 = vunpack.c.l.b16 %v66
  %v570 = vunpack.c.l.b16 %v67
  %v571 = vunpack.c.l.b16 %v68
  %v572 = vunpack.c.l.b16 %v69
  %v573 = vunpack.c.l.b16 %v70
  %v574 = vunpack.c.l.b16 %v71
  %v575 = vunpack.c.l.b16 %v72
  %v576 = vunpack.c.l.b16 %v73
  %v577 = vunpack.c.l.b16 %v74
  %v578 = vunpack.c.l.b16 %v75
  %v579 = vunpack.c.l.b16 %v76
  %v580 = vpack.c.b16 %v557, %v556
  %v581 = vpack.c.b16 %v559, %v558
  %v582 = vpack.c.b16 %v561, %v560
  %v583 = vpack.c.b16 %v563, %v562
  %v584 = vpack.c.b16 %v565, %v564
  %v585 = vpack.c.b16 %v567, %v566
  %v586 = vpack.c.b16 %v569, %v568
  %v587 = vpack.c.b16 %v571, %v570
  %v588 = vpack.c.b16 %v573, %v572
  %v589 = vpack.c.b16 %v575, %v574
  %v590 = vpack.c.b16 %v577, %v576
  %v591 = vpack.c.b16 %v579, %v578
  %v605 = vsel %vm289, %v529, 0
  %v608 = vsel %vm289, %v531, 0
  %610 = vmatprep.subr.bf16.mxu0 0
  %611 = vmatpush1.bf16.msra.mxu0 %v580
  %612 = vmatprep.subr.bf16.mxu0 0
  %613 = vmatpush1.bf16.msra.mxu0 %v581
  %614 = vmatprep.subr.bf16.mxu0 0
  %615 = vmatpush1.bf16.msra.mxu0 %v582
  %616 = vmatprep.subr.bf16.mxu0 0
  %617 = vmatpush1.bf16.msra.mxu0 %v583
  %618 = vmatprep.subr.bf16.mxu0 0
  %619 = vmatpush1.bf16.msra.mxu0 %v584
  %620 = vmatprep.subr.bf16.mxu0 0
  %621 = vmatpush1.bf16.msra.mxu0 %v585
  %622 = vmatprep.subr.bf16.mxu0 0
  %623 = vmatpush1.bf16.msra.mxu0 %v586
  %624 = vmatprep.subr.bf16.mxu0 0
  %625 = vmatpush1.bf16.msra.mxu0 %v587
  %626 = vmatprep.subr.bf16.mxu0 0
  %627 = vmatpush1.bf16.msra.mxu0 %v588
  %628 = vmatprep.subr.bf16.mxu0 0
  %629 = vmatpush1.bf16.msra.mxu0 %v589
  %630 = vmatprep.subr.bf16.mxu0 0
  %631 = vmatpush1.bf16.msra.mxu0 %v590
  %632 = vmatprep.subr.bf16.mxu0 0
  %633 = vmatpush1.bf16.msra.mxu0 %v591
  %634 = vmatprep.subr.bf16.mxu0 0
  %635 = vmatpush1.bf16.msra.mxu0 0
  %636 = vmatprep.subr.bf16.mxu0 0
  %637 = vmatpush1.bf16.msra.mxu0 0
  %638 = vmatprep.subr.bf16.mxu0 0
  %639 = vmatpush1.bf16.msra.mxu0 0
  %640 = vmatprep.subr.bf16.mxu0 0
  %641 = vmatpush1.bf16.msra.mxu0 0
  %642 = vmatprep.mubr.bf16.mxu0 %v605
  %643 = vmatmul.mubr.bf16.gmra.mrb[0].mxu0 %v528
  %v644 = vpop.f32.mrb[0].mxu0
  %v645 = vadd.f32 0.0, %v644
  %v646 = vpop.f32.mrb[0].mxu0
  %v647 = vpop.f32.mrb[0].mxu0
  %v648 = vadd.f32 0.0, %v647
  %v649 = vpop.f32.mrb[0].mxu0
  %650 = vmatprep.mubr.bf16.mxu0 %v608
  %651 = vmatmul.mubr.bf16.gmra.mrb[0].mxu0 %v530
  %v652 = vpop.f32.mrb[0].mxu0
  %v653 = vadd.f32 0.0, %v652
  %v654 = vpop.f32.mrb[0].mxu0
  %v655 = vpop.f32.mrb[0].mxu0
  %v656 = vadd.f32 0.0, %v655
  %v657 = vpop.f32.mrb[0].mxu0
  %658 = vdwg.mxu0
  %v659 = vsel %vm289, %v645, 0.0
  %v660 = vsel %vm289, %v648, 0.0
  %v661 = vadd.f32 %v659, %v660
  %v662 = vsel %vm289, %v653, 0.0
  %v663 = vadd.f32 %v661, %v662
  %v664 = vsel %vm289, %v656, 0.0
  %v665 = vadd.f32 %v663, %v664
  %v666 = vrot.slane %v665, 4
  %v667 = vadd.f32 %v665, %v666
  %v668 = vrot.slane %v667, 2
  %v669 = vadd.f32 %v667, %v668
  %v670 = vrot.slane %v669, 1
  %v671 = vadd.f32 %v669, %v670
  %v672 = vmul.f32 %v645, %v645
  %v673 = vmul.f32 %v648, %v648
  %v674 = vmul.f32 %v653, %v653
  %v675 = vmul.f32 %v656, %v656
  %v676 = vsel %vm289, %v672, 0.0
  %v677 = vsel %vm289, %v673, 0.0
  %v678 = vadd.f32 %v676, %v677
  %v679 = vsel %vm289, %v674, 0.0
  %v680 = vadd.f32 %v678, %v679
  %v681 = vsel %vm289, %v675, 0.0
  %v682 = vadd.f32 %v680, %v681
  %v683 = vrot.slane %v682, 4
  %v684 = vadd.f32 %v682, %v683
  %v685 = vrot.slane %v684, 2
  %v686 = vadd.f32 %v684, %v685
  %v687 = vrot.slane %v686, 1
  %v688 = vadd.f32 %v686, %v687
  %v689 = vsel %vm320, %v671, %v688
  %v690 = vpack.c.bf16 %v689, %v689
  %v691 = vunpack.c.l.bf16 %v690
  %v692 = vsub.f32 %v689, %v691
  %v693 = vpack.c.bf16 %v692, %v692
  %v695 = vrot.slane %v693, 7
  %v698 = vsel %vm320, %v690, %v695
  %v699 = vsel %vm289, %v698, 0
  %701 = vmatprep.subr.bf16.mxu0 0
  %702 = vmatpush1.bf16.msra.mxu0 %v347
  %703 = vmatprep.subr.bf16.mxu0 0
  %704 = vmatpush1.bf16.msra.mxu0 %v348
  %705 = vmatprep.subr.bf16.mxu0 0
  %706 = vmatpush1.bf16.msra.mxu0 %v349
  %707 = vmatprep.subr.bf16.mxu0 0
  %708 = vmatpush1.bf16.msra.mxu0 %v350
  %709 = vmatprep.subr.bf16.mxu0 0
  %710 = vmatpush1.bf16.msra.mxu0 0
  %711 = vmatprep.subr.bf16.mxu0 0
  %712 = vmatpush1.bf16.msra.mxu0 0
  %713 = vmatprep.subr.bf16.mxu0 0
  %714 = vmatpush1.bf16.msra.mxu0 0
  %715 = vmatprep.subr.bf16.mxu0 0
  %716 = vmatpush1.bf16.msra.mxu0 0
  %717 = vmatprep.subr.bf16.mxu0 0
  %718 = vmatpush1.bf16.msra.mxu0 0
  %719 = vmatprep.subr.bf16.mxu0 0
  %720 = vmatpush1.bf16.msra.mxu0 0
  %721 = vmatprep.subr.bf16.mxu0 0
  %722 = vmatpush1.bf16.msra.mxu0 0
  %723 = vmatprep.subr.bf16.mxu0 0
  %724 = vmatpush1.bf16.msra.mxu0 0
  %725 = vmatprep.subr.bf16.mxu0 0
  %726 = vmatpush1.bf16.msra.mxu0 0
  %727 = vmatprep.subr.bf16.mxu0 0
  %728 = vmatpush1.bf16.msra.mxu0 0
  %729 = vmatprep.subr.bf16.mxu0 0
  %730 = vmatpush1.bf16.msra.mxu0 0
  %731 = vmatprep.subr.bf16.mxu0 0
  %732 = vmatpush1.bf16.msra.mxu0 0
  %733 = vmatprep.mubr.bf16.mxu0 0
  %734 = vmatmul.mubr.bf16.gmra.mrb[0].mxu0 %v699
  %v735 = vpop.f32.mrb[0].mxu0
  %v736 = vadd.f32 0.0, %v735
  %v737 = vpop.f32.mrb[0].mxu0
  %v738 = vpop.f32.mrb[0].mxu0
  %v739 = vpop.f32.mrb[0].mxu0
  %740 = vdwg.mxu0
  %v742 = vrot.slane %v736, 2
  %v744 = vadd.f32 %v736, %v742
  %v745 = vmul.f32 %v744, 0.001953125
  %v746 = vmul.f32 %v745, %v745
  %v748 = vrot.slane %v746, 7
  %v750 = vsub.f32 %v745, %v748
  %v751 = vmax.f32 %v750, 0.0
  %v752 = vadd.f32 %v751, 1e-05
  %v753 = vrsqrt.pop %v752
  %v755 = vrot.slane %v127, 7
  %v757 = vmul.f32 %v753, %v755
  %v758 = vlaneseq
  %v759 = vshrl.u32 %v758, 7
  %v760 = vsub.s32 0, %v759
  %v761 = vrot.slane %v745, %v760
  %v762 = vsub.f32 %v645, %v761
  %v763 = vsub.f32 %v648, %v761
  %v764 = vsub.f32 %v653, %v761
  %v765 = vsub.f32 %v656, %v761
  %v766 = vlaneseq
  %v767 = vshrl.u32 %v766, 7
  %v768 = vsub.s32 1, %v767
  %v769 = vrot.slane %v757, %v768
  %v770 = vmul.f32 %v762, %v769
  %v771 = vmul.f32 %v763, %v769
  %v772 = vmul.f32 %v764, %v769
  %v773 = vmul.f32 %v765, %v769
  %v774 = vlaneseq
  %v775 = vshrl.u32 %v774, 7
  %v776 = vsub.s32 0, %v775
  %v777 = vrot.slane %v128, %v776
  %v778 = vadd.f32 %v770, %v777
  %v779 = vadd.f32 %v771, %v777
  %v780 = vadd.f32 %v772, %v777
  %v781 = vadd.f32 %v773, %v777
  %v782 = vmax.f32 %v778, 0.0
  %v783 = vmax.f32 %v779, 0.0
  %v784 = vmax.f32 %v780, 0.0
  %v785 = vmax.f32 %v781, 0.0
  %v786 = vpack.c.bf16 %v783, %v782
  %v787 = vpack.c.bf16 %v785, %v784
  %v796 = vunpack.c.l.b16 %v85
  %v797 = vunpack.c.h.b16 %v85
  %v798 = vunpack.c.l.b16 %v86
  %v799 = vunpack.c.h.b16 %v86
  %v800 = vunpack.c.l.b16 %v87
  %v801 = vunpack.c.h.b16 %v87
  %v802 = vunpack.c.l.b16 %v88
  %v803 = vunpack.c.h.b16 %v88
  %v804 = vunpack.c.l.b16 %v89
  %v805 = vunpack.c.h.b16 %v89
  %v806 = vunpack.c.l.b16 %v90
  %v807 = vunpack.c.h.b16 %v90
  %v808 = vunpack.c.l.b16 %v91
  %v809 = vunpack.c.h.b16 %v91
  %v810 = vunpack.c.l.b16 %v92
  %v811 = vunpack.c.h.b16 %v92
  %v812 = vpack.c.b16 %v798, %v796
  %v813 = vpack.c.b16 %v799, %v797
  %v814 = vpack.c.b16 %v802, %v800
  %v815 = vpack.c.b16 %v803, %v801
  %v816 = vpack.c.b16 %v806, %v804
  %v817 = vpack.c.b16 %v807, %v805
  %v818 = vpack.c.b16 %v810, %v808
  %v819 = vpack.c.b16 %v811, %v809
  %v829 = vsel %vm289, %v786, 0
  %v832 = vsel %vm289, %v787, 0
  %834 = vmatprep.subr.bf16.mxu0 %v813
  %835 = vmatpush1.bf16.msra.mxu0 %v812
  %836 = vmatprep.subr.bf16.mxu0 %v815
  %837 = vmatpush1.bf16.msra.mxu0 %v814
  %838 = vmatprep.subr.bf16.mxu0 %v817
  %839 = vmatpush1.bf16.msra.mxu0 %v816
  %840 = vmatprep.subr.bf16.mxu0 %v819
  %841 = vmatpush1.bf16.msra.mxu0 %v818
  %842 = vmatprep.subr.bf16.mxu0 0
  %843 = vmatpush1.bf16.msra.mxu0 0
  %844 = vmatprep.subr.bf16.mxu0 0
  %845 = vmatpush1.bf16.msra.mxu0 0
  %846 = vmatprep.subr.bf16.mxu0 0
  %847 = vmatpush1.bf16.msra.mxu0 0
  %848 = vmatprep.subr.bf16.mxu0 0
  %849 = vmatpush1.bf16.msra.mxu0 0
  %850 = vmatprep.subr.bf16.mxu0 0
  %851 = vmatpush1.bf16.msra.mxu0 0
  %852 = vmatprep.subr.bf16.mxu0 0
  %853 = vmatpush1.bf16.msra.mxu0 0
  %854 = vmatprep.subr.bf16.mxu0 0
  %855 = vmatpush1.bf16.msra.mxu0 0
  %856 = vmatprep.subr.bf16.mxu0 0
  %857 = vmatpush1.bf16.msra.mxu0 0
  %858 = vmatprep.subr.bf16.mxu0 0
  %859 = vmatpush1.bf16.msra.mxu0 0
  %860 = vmatprep.subr.bf16.mxu0 0
  %861 = vmatpush1.bf16.msra.mxu0 0
  %862 = vmatprep.subr.bf16.mxu0 0
  %863 = vmatpush1.bf16.msra.mxu0 0
  %864 = vmatprep.subr.bf16.mxu0 0
  %865 = vmatpush1.bf16.msra.mxu0 0
  %866 = vmatprep.mubr.bf16.mxu0 0
  %867 = vmatmul.mubr.bf16.gmra.mrb[0].mxu0 %v829
  %v868 = vpop.f32.mrb[0].mxu0
  %v869 = vadd.f32 0.0, %v868
  %v870 = vpop.f32.mrb[0].mxu0
  %v871 = vadd.f32 0.0, %v870
  %v872 = vpop.f32.mrb[0].mxu0
  %v873 = vadd.f32 0.0, %v872
  %v874 = vpop.f32.mrb[0].mxu0
  %v875 = vadd.f32 0.0, %v874
  %876 = vmatprep.mubr.bf16.mxu0 0
  %877 = vmatmul.mubr.bf16.gmra.mrb[0].mxu0 %v832
  %v878 = vpop.f32.mrb[0].mxu0
  %v879 = vadd.f32 0.0, %v878
  %v880 = vpop.f32.mrb[0].mxu0
  %v881 = vadd.f32 0.0, %v880
  %v882 = vpop.f32.mrb[0].mxu0
  %v883 = vadd.f32 0.0, %v882
  %v884 = vpop.f32.mrb[0].mxu0
  %v885 = vadd.f32 0.0, %v884
  %886 = vdwg.mxu0
  %v887 = vadd.f32 %v869, %v873
  %v888 = vadd.f32 %v887, %v879
  %v889 = vadd.f32 %v888, %v883
  %v890 = vrot.slane %v889, 4
  %v891 = vadd.f32 %v889, %v890
  %v892 = vrot.slane %v891, 2
  %v893 = vadd.f32 %v891, %v892
  %v894 = vrot.slane %v893, 1
  %v895 = vadd.f32 %v893, %v894
  %v896 = vadd.f32 %v871, %v875
  %v897 = vadd.f32 %v896, %v881
  %v898 = vadd.f32 %v897, %v885
  %v899 = vrot.slane %v898, 4
  %v900 = vadd.f32 %v898, %v899
  %v901 = vrot.slane %v900, 2
  %v902 = vadd.f32 %v900, %v901
  %v903 = vrot.slane %v902, 1
  %v904 = vadd.f32 %v902, %v903
  %v905 = vmul.f32 %v869, %v869
  %v906 = vmul.f32 %v871, %v871
  %v907 = vmul.f32 %v873, %v873
  %v908 = vmul.f32 %v875, %v875
  %v909 = vmul.f32 %v879, %v879
  %v910 = vmul.f32 %v881, %v881
  %v911 = vmul.f32 %v883, %v883
  %v912 = vmul.f32 %v885, %v885
  %v913 = vadd.f32 %v905, %v907
  %v914 = vadd.f32 %v913, %v909
  %v915 = vadd.f32 %v914, %v911
  %v916 = vrot.slane %v915, 4
  %v917 = vadd.f32 %v915, %v916
  %v918 = vrot.slane %v917, 2
  %v919 = vadd.f32 %v917, %v918
  %v920 = vrot.slane %v919, 1
  %v921 = vadd.f32 %v919, %v920
  %v922 = vadd.f32 %v906, %v908
  %v923 = vadd.f32 %v922, %v910
  %v924 = vadd.f32 %v923, %v912
  %v925 = vrot.slane %v924, 4
  %v926 = vadd.f32 %v924, %v925
  %v927 = vrot.slane %v926, 2
  %v928 = vadd.f32 %v926, %v927
  %v929 = vrot.slane %v928, 1
  %v930 = vadd.f32 %v928, %v929
  %v931 = vsel %vm320, %v895, %v921
  %v932 = vsel %vm320, %v904, %v930
  %v933 = vpack.c.bf16 %v931, %v931
  %v934 = vpack.c.bf16 %v932, %v932
  %v935 = vunpack.c.l.bf16 %v933
  %v936 = vunpack.c.l.bf16 %v934
  %v937 = vsub.f32 %v931, %v935
  %v938 = vsub.f32 %v932, %v936
  %v939 = vpack.c.bf16 %v937, %v937
  %v940 = vpack.c.bf16 %v938, %v938
  %v943 = vrot.slane %v939, 7
  %v944 = vrot.slane %v940, 7
  %v947 = vsel %vm320, %v933, %v943
  %v951 = vsel %vm320, %v934, %v944
  %v985 = vunpack.c.l.b16 %v93
  %v986 = vunpack.c.h.b16 %v93
  %v987 = vunpack.c.l.b16 %v94
  %v988 = vunpack.c.h.b16 %v94
  %v989 = vunpack.c.l.b16 %v95
  %v990 = vunpack.c.h.b16 %v95
  %v991 = vunpack.c.l.b16 %v96
  %v992 = vunpack.c.h.b16 %v96
  %v993 = vunpack.c.l.b16 %v97
  %v994 = vunpack.c.h.b16 %v97
  %v995 = vunpack.c.l.b16 %v98
  %v996 = vunpack.c.h.b16 %v98
  %v997 = vunpack.c.l.b16 %v99
  %v998 = vunpack.c.h.b16 %v99
  %v999 = vunpack.c.l.b16 %v100
  %v1000 = vunpack.c.h.b16 %v100
  %v1001 = vunpack.c.l.b16 %v101
  %v1002 = vunpack.c.h.b16 %v101
  %v1003 = vunpack.c.l.b16 %v102
  %v1004 = vunpack.c.h.b16 %v102
  %v1005 = vunpack.c.l.b16 %v103
  %v1006 = vunpack.c.h.b16 %v103
  %v1007 = vunpack.c.l.b16 %v104
  %v1008 = vunpack.c.h.b16 %v104
  %v1009 = vunpack.c.l.b16 %v105
  %v1010 = vunpack.c.h.b16 %v105
  %v1011 = vunpack.c.l.b16 %v106
  %v1012 = vunpack.c.h.b16 %v106
  %v1013 = vunpack.c.l.b16 %v107
  %v1014 = vunpack.c.h.b16 %v107
  %v1015 = vunpack.c.l.b16 %v108
  %v1016 = vunpack.c.h.b16 %v108
  %v1017 = vunpack.c.l.b16 %v109
  %v1018 = vunpack.c.h.b16 %v109
  %v1019 = vunpack.c.l.b16 %v110
  %v1020 = vunpack.c.h.b16 %v110
  %v1021 = vunpack.c.l.b16 %v111
  %v1022 = vunpack.c.h.b16 %v111
  %v1023 = vunpack.c.l.b16 %v112
  %v1024 = vunpack.c.h.b16 %v112
  %v1025 = vunpack.c.l.b16 %v113
  %v1026 = vunpack.c.h.b16 %v113
  %v1027 = vunpack.c.l.b16 %v114
  %v1028 = vunpack.c.h.b16 %v114
  %v1029 = vunpack.c.l.b16 %v115
  %v1030 = vunpack.c.h.b16 %v115
  %v1031 = vunpack.c.l.b16 %v116
  %v1032 = vunpack.c.h.b16 %v116
  %v1033 = vunpack.c.l.b16 %v117
  %v1034 = vunpack.c.h.b16 %v117
  %v1035 = vunpack.c.l.b16 %v118
  %v1036 = vunpack.c.h.b16 %v118
  %v1037 = vunpack.c.l.b16 %v119
  %v1038 = vunpack.c.h.b16 %v119
  %v1039 = vunpack.c.l.b16 %v120
  %v1040 = vunpack.c.h.b16 %v120
  %v1041 = vunpack.c.l.b16 %v121
  %v1042 = vunpack.c.h.b16 %v121
  %v1043 = vunpack.c.l.b16 %v122
  %v1044 = vunpack.c.h.b16 %v122
  %v1045 = vunpack.c.l.b16 %v123
  %v1046 = vunpack.c.h.b16 %v123
  %v1047 = vunpack.c.l.b16 %v124
  %v1048 = vunpack.c.h.b16 %v124
  %v1049 = vpack.c.b16 %v987, %v985
  %v1050 = vpack.c.b16 %v988, %v986
  %v1051 = vpack.c.b16 %v991, %v989
  %v1052 = vpack.c.b16 %v992, %v990
  %v1053 = vpack.c.b16 %v995, %v993
  %v1054 = vpack.c.b16 %v996, %v994
  %v1055 = vpack.c.b16 %v999, %v997
  %v1056 = vpack.c.b16 %v1000, %v998
  %v1057 = vpack.c.b16 %v1003, %v1001
  %v1058 = vpack.c.b16 %v1004, %v1002
  %v1059 = vpack.c.b16 %v1007, %v1005
  %v1060 = vpack.c.b16 %v1008, %v1006
  %v1061 = vpack.c.b16 %v1011, %v1009
  %v1062 = vpack.c.b16 %v1012, %v1010
  %v1063 = vpack.c.b16 %v1015, %v1013
  %v1064 = vpack.c.b16 %v1016, %v1014
  %v1065 = vpack.c.b16 %v1019, %v1017
  %v1066 = vpack.c.b16 %v1020, %v1018
  %v1067 = vpack.c.b16 %v1023, %v1021
  %v1068 = vpack.c.b16 %v1024, %v1022
  %v1069 = vpack.c.b16 %v1027, %v1025
  %v1070 = vpack.c.b16 %v1028, %v1026
  %v1071 = vpack.c.b16 %v1031, %v1029
  %v1072 = vpack.c.b16 %v1032, %v1030
  %v1073 = vpack.c.b16 %v1035, %v1033
  %v1074 = vpack.c.b16 %v1036, %v1034
  %v1075 = vpack.c.b16 %v1039, %v1037
  %v1076 = vpack.c.b16 %v1040, %v1038
  %v1077 = vpack.c.b16 %v1043, %v1041
  %v1078 = vpack.c.b16 %v1044, %v1042
  %v1079 = vpack.c.b16 %v1047, %v1045
  %v1080 = vpack.c.b16 %v1048, %v1046
  %1113 = vmatprep.subr.bf16.mxu0 %v1050
  %1114 = vmatpush1.bf16.msra.mxu0 %v1049
  %1115 = vmatprep.subr.bf16.mxu0 %v1052
  %1116 = vmatpush1.bf16.msra.mxu0 %v1051
  %1117 = vmatprep.subr.bf16.mxu0 %v1054
  %1118 = vmatpush1.bf16.msra.mxu0 %v1053
  %1119 = vmatprep.subr.bf16.mxu0 %v1056
  %1120 = vmatpush1.bf16.msra.mxu0 %v1055
  %1121 = vmatprep.subr.bf16.mxu0 %v1058
  %1122 = vmatpush1.bf16.msra.mxu0 %v1057
  %1123 = vmatprep.subr.bf16.mxu0 %v1060
  %1124 = vmatpush1.bf16.msra.mxu0 %v1059
  %1125 = vmatprep.subr.bf16.mxu0 %v1062
  %1126 = vmatpush1.bf16.msra.mxu0 %v1061
  %1127 = vmatprep.subr.bf16.mxu0 %v1064
  %1128 = vmatpush1.bf16.msra.mxu0 %v1063
  %1129 = vmatprep.subr.bf16.mxu0 %v1066
  %1130 = vmatpush1.bf16.msra.mxu0 %v1065
  %1131 = vmatprep.subr.bf16.mxu0 %v1068
  %1132 = vmatpush1.bf16.msra.mxu0 %v1067
  %1133 = vmatprep.subr.bf16.mxu0 %v1070
  %1134 = vmatpush1.bf16.msra.mxu0 %v1069
  %1135 = vmatprep.subr.bf16.mxu0 %v1072
  %1136 = vmatpush1.bf16.msra.mxu0 %v1071
  %1137 = vmatprep.subr.bf16.mxu0 %v1074
  %1138 = vmatpush1.bf16.msra.mxu0 %v1073
  %1139 = vmatprep.subr.bf16.mxu0 %v1076
  %1140 = vmatpush1.bf16.msra.mxu0 %v1075
  %1141 = vmatprep.subr.bf16.mxu0 %v1078
  %1142 = vmatpush1.bf16.msra.mxu0 %v1077
  %1143 = vmatprep.subr.bf16.mxu0 %v1080
  %1144 = vmatpush1.bf16.msra.mxu0 %v1079
  %1145 = vmatprep.mubr.bf16.mxu0 %v951
  %1146 = vmatmul.mubr.bf16.gmra.mrb[0].mxu0 %v947
  %v1147 = vpop.f32.mrb[0].mxu0
  %v1148 = vadd.f32 0.0, %v1147
  %v1149 = vpop.f32.mrb[0].mxu0
  %v1150 = vadd.f32 0.0, %v1149
  %v1151 = vpop.f32.mrb[0].mxu0
  %v1152 = vpop.f32.mrb[0].mxu0
  %1153 = vdwg.mxu0
  %v1156 = vrot.slane %v1148, 2
  %v1157 = vrot.slane %v1150, 2
  %v1160 = vadd.f32 %v1148, %v1156
  %v1161 = vadd.f32 %v1150, %v1157
  %v1162 = vmul.f32 %v1160, 0.001953125
  %v1163 = vmul.f32 %v1161, 0.001953125
  %v1164 = vmul.f32 %v1162, %v1162
  %v1165 = vmul.f32 %v1163, %v1163
  %v1168 = vrot.slane %v1164, 7
  %v1169 = vrot.slane %v1165, 7
  %v1172 = vsub.f32 %v1162, %v1168
  %v1173 = vsub.f32 %v1163, %v1169
  %v1174 = vmax.f32 %v1172, 0.0
  %v1175 = vmax.f32 %v1173, 0.0
  %v1176 = vadd.f32 %v1174, 1e-05
  %v1177 = vadd.f32 %v1175, 1e-05
  %v1178 = vrsqrt.pop %v1176
  %v1179 = vrsqrt.pop %v1177
  %v1181 = vlaneseq
  %v1182 = vshrl.u32 %v1181, 7
  %v1183 = vsub.s32 0, %v1182
  %v1184 = vrot.slane %v129, %v1183
  %v1185 = vlaneseq
  %v1186 = vshrl.u32 %v1185, 7
  %v1187 = vsub.s32 1, %v1186
  %v1188 = vrot.slane %v129, %v1187
  %v1191 = vmul.f32 %v1178, %v1184
  %v1192 = vmul.f32 %v1179, %v1188
  %v1193 = vlaneseq
  %v1194 = vshrl.u32 %v1193, 7
  %v1195 = vsub.s32 0, %v1194
  %v1196 = vrot.slane %v1162, %v1195
  %v1197 = vlaneseq
  %v1198 = vshrl.u32 %v1197, 7
  %v1199 = vsub.s32 0, %v1198
  %v1200 = vrot.slane %v1163, %v1199
  %v1201 = vsub.f32 %v869, %v1196
  %v1202 = vsub.f32 %v871, %v1200
  %v1203 = vsub.f32 %v873, %v1196
  %v1204 = vsub.f32 %v875, %v1200
  %v1205 = vsub.f32 %v879, %v1196
  %v1206 = vsub.f32 %v881, %v1200
  %v1207 = vsub.f32 %v883, %v1196
  %v1208 = vsub.f32 %v885, %v1200
  %v1209 = vlaneseq
  %v1210 = vshrl.u32 %v1209, 7
  %v1211 = vsub.s32 1, %v1210
  %v1212 = vrot.slane %v1191, %v1211
  %v1213 = vlaneseq
  %v1214 = vshrl.u32 %v1213, 7
  %v1215 = vsub.s32 1, %v1214
  %v1216 = vrot.slane %v1192, %v1215
  %v1217 = vmul.f32 %v1201, %v1212
  %v1218 = vmul.f32 %v1202, %v1216
  %v1219 = vmul.f32 %v1203, %v1212
  %v1220 = vmul.f32 %v1204, %v1216
  %v1221 = vmul.f32 %v1205, %v1212
  %v1222 = vmul.f32 %v1206, %v1216
  %v1223 = vmul.f32 %v1207, %v1212
  %v1224 = vmul.f32 %v1208, %v1216
  %v1226 = vlaneseq
  %v1227 = vshrl.u32 %v1226, 7
  %v1228 = vsub.s32 0, %v1227
  %v1229 = vrot.slane %v131, %v1228
  %v1230 = vlaneseq
  %v1231 = vshrl.u32 %v1230, 7
  %v1232 = vsub.s32 1, %v1231
  %v1233 = vrot.slane %v131, %v1232
  %v1236 = vadd.f32 %v1217, %v1229
  %v1237 = vadd.f32 %v1218, %v1233
  %v1238 = vadd.f32 %v1219, %v1229
  %v1239 = vadd.f32 %v1220, %v1233
  %v1240 = vadd.f32 %v1221, %v1229
  %v1241 = vadd.f32 %v1222, %v1233
  %v1242 = vadd.f32 %v1223, %v1229
  %v1243 = vadd.f32 %v1224, %v1233
  %v1244 = vadd.f32 %v1236, %v132
  %v1245 = vadd.f32 %v1237, %v133
  %v1246 = vadd.f32 %v1238, %v134
  %v1247 = vadd.f32 %v1239, %v135
  %v1248 = vadd.f32 %v1240, %v136
  %v1249 = vadd.f32 %v1241, %v137
  %v1250 = vadd.f32 %v1242, %v138
  %v1251 = vadd.f32 %v1243, %v139
  %v1252 = vmax.f32 %v1244, 0.0
  %v1253 = vmax.f32 %v1245, 0.0
  %v1254 = vmax.f32 %v1246, 0.0
  %v1255 = vmax.f32 %v1247, 0.0
  %v1256 = vmax.f32 %v1248, 0.0
  %v1257 = vmax.f32 %v1249, 0.0
  %v1258 = vmax.f32 %v1250, 0.0
  %v1259 = vmax.f32 %v1251, 0.0
  %1260 = vst [vmem:[%s5] sm:$0xff] %v1252
  %1261 = vst [vmem:[%s5 + $0x8] sm:$0xff] %v1253
  %1262 = vst [vmem:[%s5 + $0x10] sm:$0xff] %v1254
  %1263 = vst [vmem:[%s5 + $0x18] sm:$0xff] %v1255
  %1264 = vst [vmem:[%s5 + $0x20] sm:$0xff] %v1256
  %1265 = vst [vmem:[%s5 + $0x28] sm:$0xff] %v1257
  %1266 = vst [vmem:[%s5 + $0x30] sm:$0xff] %v1258
  %1267 = vst [vmem:[%s5 + $0x38] sm:$0xff] %v1259
  // Predicated region
  $region22: #{bottleneck_pallas.1} parent=0 // pred_check
    _
  $region23: #{bottleneck_pallas.1} parent=0 // pred_check_branch
    %1269 = sbr.rel (0) target = $region25
  $region24: #{bottleneck_pallas.1} parent=0 // pred_region
    _
  $region25: #{bottleneck_pallas.1} parent=0 // pred_fallthru
    _
  // Predicated region
  $region26: #{bottleneck_pallas.1} parent=0 // pred_check
    _
  $region27: #{bottleneck_pallas.1} parent=0 // pred_check_branch
    %1271 = sbr.rel (0) target = $region29
  $region28: #{bottleneck_pallas.1} parent=0 // pred_region
    _
  $region29: #{bottleneck_pallas.1} parent=0 // pred_fallthru
    _

</llo_original>
